<compile_context>
chip_gen: v5e
topology: v5e:2x2
jax: 0.10.0
libtpu: 0.0.40
codegen_flags: <defaults>
</compile_context>

<pallas_src>
import functools

import numpy as np
import jax
import jax.numpy as jnp
from jax.experimental import pallas as pl
from jax.experimental.pallas import tpu as pltpu


# ----------------------------------------------------------------------------
# Pallas kernel: one block of BW windows per grid step.
# ----------------------------------------------------------------------------
def _window_attn_kernel(x_ref, wqkv_ref, bqkv_ref, bias_ref, wproj_ref, bproj_ref,
                        o_ref, *, num_heads):
    BW, N, C = x_ref.shape
    hd = C // num_heads
    nWb = bias_ref.shape[1]          # number of distinct per-window bias/mask slabs (1 or nW)
    G = BW // nWb                    # image-batches covered by this block of windows
    cd = x_ref.dtype                 # MXU-operand dtype (bf16 on v6e/v7x, f32 otherwise)

    # (BW, N, C) -> (BW*N, C): merge of leading dims, layout-free.
    x2 = x_ref[...].reshape(BW * N, C)

    # Fused qkv projection; the attention scale is already folded into the q columns.
    # f32 accumulation on the MXU.
    qkv = jnp.dot(x2, wqkv_ref[...], preferred_element_type=jnp.float32) + bqkv_ref[...]

    # Resident rel-pos bias (+ folded Swin mask), loaded once per grid step: (nH, nWb, N, N) f32.
    bias = bias_ref[...]

    head_ctx = []
    for h in range(num_heads):       # static unroll; all matmuls below are BW-window batched
        q = qkv[:, h * hd:(h + 1) * hd].reshape(BW, N, hd).astype(cd)
        k = qkv[:, C + h * hd:C + (h + 1) * hd].reshape(BW, N, hd).astype(cd)
        v = qkv[:, 2 * C + h * hd:2 * C + (h + 1) * hd].reshape(BW, N, hd).astype(cd)

        # (BW, N, N) attention logits in f32.
        attn = jnp.einsum("bqd,bkd->bqk", q, k, preferred_element_type=jnp.float32)

        # Add the VMEM-resident rel-pos bias (+ folded Swin mask).  Window-in-image index of
        # block-row j is j % nWb (blocks start at multiples of nWb), so a leading-dim reshape
        # lines windows up with the (nWb, N, N) bias slab — mirrors attn.view(B_//nW, nW, ...).
        attn = (attn.reshape(G, nWb, N, N) + bias[h][None]).reshape(BW, N, N)

        # Max-stabilized softmax in f32; unnormalized probs go straight to the MXU and the
        # 1/denominator (EUP approx reciprocal) is applied to the small (N, hd) context.
        attn = attn - jnp.max(attn, axis=-1, keepdims=True)
        p = jnp.exp(attn)                                                   # values in (0, 1]
        inv_den = pl.reciprocal(jnp.sum(p, axis=-1, keepdims=True), approx=True)

        ctx_h = jnp.einsum("bqk,bkd->bqd", p.astype(cd), v,
                           preferred_element_type=jnp.float32)
        head_ctx.append(ctx_h * inv_den)

    # Merge heads (one concat per BW windows), then output projection.
    ctx = jnp.concatenate(head_ctx, axis=-1).reshape(BW * N, C).astype(cd)
    y = jnp.dot(ctx, wproj_ref[...], preferred_element_type=jnp.float32) + bproj_ref[...]
    o_ref[...] = y.reshape(BW, N, C).astype(o_ref.dtype)


def _choose_block_windows(B_, N, nW_b, target_rows=512):
    """Pick BW: multiple of nW_b, divides B_, BW*N near the DMA/MXU sweet spot,
    preferring an even grid length so both v7x TensorCores get work."""
    cands = [bw for bw in range(nW_b, B_ + 1, nW_b) if B_ % bw == 0]
    good = [bw for bw in cands if bw * N <= target_rows] or [cands[0]]
    bw = max(good)
    even = [b for b in good if (B_ // b) % 2 == 0]
    if (B_ // bw) % 2 == 1 and even and max(even) * 2 >= bw:
        bw = max(even)
    return bw


def window_attention_pallas(x, wqkv_t, bqkv, wproj_t, bproj,
                            rel_pos_table, rel_pos_index, mask=None,
                            *, num_heads, scale, block_windows=None):
    """x: (B_, N, C) with rows ordered (batch-major, window-minor);
    wqkv_t: (C, 3C) = W_qkv^T; wproj_t: (C, C) = W_proj^T;
    mask: optional (nW, N, N) additive Swin mask."""
    B_, N, C = x.shape
    cd = x.dtype

    # --- host-side prep (outside the kernel, fuses under jit) -----------------
    # Fold the attention scale into the q columns of the fused qkv weight/bias.
    colscale = jnp.concatenate([jnp.full((C,), scale, jnp.float32),
                                jnp.ones((2 * C,), jnp.float32)])
    wqkv_s = (wqkv_t.astype(jnp.float32) * colscale[None, :]).astype(cd)
    bqkv_s = (bqkv.astype(jnp.float32) * colscale).reshape(1, 3 * C)
    wproj_s = wproj_t.astype(cd)
    bproj_s = bproj.astype(jnp.float32).reshape(1, C)

    # Resident bias slab: (num_heads, nW_b, N, N) f32 = rel-pos bias (+ Swin mask folded in).
    # NOT replicated over B_; constant index_map keeps it in VMEM for the whole grid.
    rel_bias = rel_pos_table[rel_pos_index.reshape(-1)].reshape(N, N, num_heads)
    rel_bias = jnp.transpose(rel_bias, (2, 0, 1)).astype(jnp.float32)       # (nH, N, N)
    if mask is None:
        bias_res = rel_bias[:, None]                                         # (nH, 1, N, N)
    else:
        bias_res = rel_bias[:, None] + mask[None].astype(jnp.float32)        # (nH, nW, N, N)
    nW_b = bias_res.shape[1]
    if B_ % nW_b:
        raise ValueError(f"B_={B_} must be a multiple of the number of windows {nW_b}")

    BW = block_windows if block_windows is not None else _choose_block_windows(B_, N, nW_b)
    if B_ % BW or BW % nW_b:
        raise ValueError(f"block_windows={BW} must divide B_={B_} and be a multiple of {nW_b}")
    grid = (B_ // BW,)

    kernel = functools.partial(_window_attn_kernel, num_heads=num_heads)
    return pl.pallas_call(
        kernel,
        out_shape=jax.ShapeDtypeStruct((B_, N, C), cd),
        grid_spec=pltpu.PrefetchScalarGridSpec(
            num_scalar_prefetch=0,
            grid=grid,
            in_specs=[
                pl.BlockSpec((BW, N, C), lambda b: (b, 0, 0)),                   # x block
                pl.BlockSpec((C, 3 * C), lambda b: (0, 0)),                      # W_qkv^T (scaled)
                pl.BlockSpec((1, 3 * C), lambda b: (0, 0)),                      # b_qkv (scaled)
                pl.BlockSpec((num_heads, nW_b, N, N), lambda b: (0, 0, 0, 0)),   # resident bias
                pl.BlockSpec((C, C), lambda b: (0, 0)),                          # W_proj^T
                pl.BlockSpec((1, C), lambda b: (0, 0)),                          # b_proj
            ],
            out_specs=pl.BlockSpec((BW, N, C), lambda b: (b, 0, 0)),
        ),
        compiler_params=pltpu.CompilerParams(dimension_semantics=("parallel",)),
    )(x, wqkv_s, bqkv_s, bias_res, wproj_s, bproj_s)


# ----------------------------------------------------------------------------
# Glue: relative position index (parameter setup, plain numpy)
# ----------------------------------------------------------------------------
def make_relative_position_index(Wh, Ww):
    coords_h = np.arange(Wh)
    coords_w = np.arange(Ww)
    coords = np.stack(np.meshgrid(coords_h, coords_w, indexing="ij"))   # (2, Wh, Ww)
    coords_flatten = coords.reshape(2, -1)                              # (2, N)
    rel = coords_flatten[:, :, None] - coords_flatten[:, None, :]       # (2, N, N)
    rel = rel.transpose(1, 2, 0).copy()                                 # (N, N, 2)
    rel[:, :, 0] += Wh - 1
    rel[:, :, 1] += Ww - 1
    rel[:, :, 0] *= 2 * Ww - 1
    return rel.sum(-1)                                                  # (N, N)


# ----------------------------------------------------------------------------
# Pure-JAX reference (mirrors the PyTorch forward) for correctness check.
# ----------------------------------------------------------------------------
def ref_forward(x, wqkv_t, bqkv, wproj_t, bproj, rel_pos_table, rel_pos_index, mask,
                *, num_heads, scale):
    B_, N, C = x.shape
    hd = C // num_heads
    qkv = (x @ wqkv_t + bqkv).reshape(B_, N, 3, num_heads, hd).transpose(2, 0, 3, 1, 4)
    q, k, v = qkv[0], qkv[1], qkv[2]
    q = q * scale
    attn = jnp.einsum("bhnd,bhmd->bhnm", q, k)
    rel_bias = rel_pos_table[rel_pos_index.reshape(-1)].reshape(N, N, num_heads)
    rel_bias = jnp.transpose(rel_bias, (2, 0, 1))
    attn = attn + rel_bias[None]
    if mask is not None:
        nW = mask.shape[0]
        attn = attn.reshape(B_ // nW, nW, num_heads, N, N) + mask[None, :, None]
        attn = attn.reshape(B_, num_heads, N, N)
    attn = jax.nn.softmax(attn, axis=-1)
    out = jnp.einsum("bhnm,bhmd->bhnd", attn, v).transpose(0, 2, 1, 3).reshape(B_, N, C)
    return out @ wproj_t + bproj


# ----------------------------------------------------------------------------
if __name__ == "__main__":
    # Small, module-consistent shapes:
    dim = 32
    window_size = (4, 4)
    num_heads = 4
    head_dim = dim // num_heads
    scale = head_dim ** (-0.5)
    N = window_size[0] * window_size[1]      # 16 tokens per window
    batch = 2
    nW = 4                                   # num_windows per image
    B_ = batch * nW                          # 8

    key = jax.random.PRNGKey(0)
    k_x, k_tab, k_wqkv, k_bqkv, k_wproj, k_bproj, k_mask = jax.random.split(key, 7)

    # Input features (num_windows*B, Mh*Mw, C)
    x = jax.random.normal(k_x, (B_, N, dim), dtype=jnp.float32)

    # Parameters (deterministic synthetic init).
    table_len = (2 * window_size[0] - 1) * (2 * window_size[1] - 1)
    rel_pos_table = 0.02 * jax.random.truncated_normal(
        k_tab, -2.0, 2.0, (table_len, num_heads), dtype=jnp.float32)
    wqkv_t = 0.05 * jax.random.normal(k_wqkv, (dim, 3 * dim), dtype=jnp.float32)   # = W_qkv^T
    bqkv = 0.05 * jax.random.normal(k_bqkv, (3 * dim,), dtype=jnp.float32)
    wproj_t = 0.05 * jax.random.normal(k_wproj, (dim, dim), dtype=jnp.float32)     # = W_proj^T
    bproj = 0.05 * jax.random.normal(k_bproj, (dim,), dtype=jnp.float32)

    rel_pos_index = jnp.asarray(
        make_relative_position_index(*window_size), dtype=jnp.int32)

    # Swin-style additive mask: 0 where allowed, -100 where blocked (nW, N, N).
    mask_bits = jax.random.bernoulli(k_mask, 0.2, (nW, N, N))
    mask = jnp.where(mask_bits, -100.0, 0.0).astype(jnp.float32)

    # f32 path (works everywhere; tolerance covers the EUP approximate reciprocal).
    ref_masked = None
    for use_mask in (None, mask):
        out = window_attention_pallas(x, wqkv_t, bqkv, wproj_t, bproj,
                                      rel_pos_table, rel_pos_index, use_mask,
                                      num_heads=num_heads, scale=scale)
        out = jax.block_until_ready(out)
        ref = ref_forward(x, wqkv_t, bqkv, wproj_t, bproj, rel_pos_table,
                          rel_pos_index, use_mask, num_heads=num_heads, scale=scale)
        if use_mask is not None:
            ref_masked = ref
        np.testing.assert_allclose(np.asarray(out), np.asarray(ref),
                                   rtol=2e-3, atol=2e-3)

    # bf16 path (v6e/v7x full-rate MXU feed; softmax/accumulation stay f32).
    out16 = window_attention_pallas(x.astype(jnp.bfloat16), wqkv_t, bqkv, wproj_t, bproj,
                                    rel_pos_table, rel_pos_index, mask,
                                    num_heads=num_heads, scale=scale)
    out16 = jax.block_until_ready(out16)
    np.testing.assert_allclose(np.asarray(out16, dtype=np.float32), np.asarray(ref_masked),
                               rtol=5e-2, atol=5e-2)

    print("KERNEL_OK")
</pallas_src>

<mosaic_0001>
module attributes {stable_mosaic.version = 11 : i64} {
  func.func @_window_attn_kernel(%arg0: i32, %arg1: memref<4x16x32xf32, #tpu.memory_space<vmem>>, %arg2: memref<32x96xf32, #tpu.memory_space<vmem>>, %arg3: memref<1x96xf32, #tpu.memory_space<vmem>>, %arg4: memref<4x1x16x16xf32, #tpu.memory_space<vmem>>, %arg5: memref<32x32xf32, #tpu.memory_space<vmem>>, %arg6: memref<1x32xf32, #tpu.memory_space<vmem>>, %arg7: memref<4x16x32xf32, #tpu.memory_space<vmem>>) attributes {dimension_semantics = [#tpu.dimension_semantics<parallel>], iteration_bounds = array<i64: 2>, scalar_prefetch = 0 : i64, scratch_operands = 0 : i64, tpu.core_type = #tpu.core_type<tc>, window_params = [{transform_indices = @transform_0, window_bounds = array<i64: 4, 16, 32>}, {pipeline_mode = #tpu.pipeline_mode<synchronous>, transform_indices = @transform_1, window_bounds = array<i64: 32, 96>}, {pipeline_mode = #tpu.pipeline_mode<synchronous>, transform_indices = @transform_2, window_bounds = array<i64: 1, 96>}, {pipeline_mode = #tpu.pipeline_mode<synchronous>, transform_indices = @transform_3, window_bounds = array<i64: 4, 1, 16, 16>}, {pipeline_mode = #tpu.pipeline_mode<synchronous>, transform_indices = @transform_4, window_bounds = array<i64: 32, 32>}, {pipeline_mode = #tpu.pipeline_mode<synchronous>, transform_indices = @transform_5, window_bounds = array<i64: 1, 32>}, {transform_indices = @transform_6, window_bounds = array<i64: 4, 16, 32>}]} {
    %c0 = arith.constant 0 : index
    %c0_0 = arith.constant 0 : index
    %c0_1 = arith.constant 0 : index
    %0 = vector.load %arg1[%c0, %c0_0, %c0_1] : memref<4x16x32xf32, #tpu.memory_space<vmem>>, vector<4x16x32xf32>
    %1 = vector.shape_cast %0 : vector<4x16x32xf32> to vector<64x32xf32>
    %c0_2 = arith.constant 0 : index
    %c0_3 = arith.constant 0 : index
    %2 = vector.load %arg2[%c0_2, %c0_3] : memref<32x96xf32, #tpu.memory_space<vmem>>, vector<32x96xf32>
    %cst = arith.constant dense<0.000000e+00> : vector<64x96xf32>
    %3 = tpu.matmul %1, %2, %cst {dimension_numbers = #tpu.dot_dimension_numbers<[1], [0], [0], [1], [0, 0, 1, 1], [], []>} : vector<64x32xf32>, vector<32x96xf32>, vector<64x96xf32> -> vector<64x96xf32>
    %c0_4 = arith.constant 0 : index
    %c0_5 = arith.constant 0 : index
    %4 = vector.load %arg3[%c0_4, %c0_5] : memref<1x96xf32, #tpu.memory_space<vmem>>, vector<1x96xf32>
    %5 = vector.broadcast %4 : vector<1x96xf32> to vector<64x96xf32>
    %6 = arith.addf %3, %5 : vector<64x96xf32>
    %c0_6 = arith.constant 0 : index
    %c0_7 = arith.constant 0 : index
    %c0_8 = arith.constant 0 : index
    %c0_9 = arith.constant 0 : index
    %7 = vector.load %arg4[%c0_6, %c0_7, %c0_8, %c0_9] : memref<4x1x16x16xf32, #tpu.memory_space<vmem>>, vector<4x1x16x16xf32>
    %8 = vector.extract_strided_slice %6 {offsets = [0, 0], sizes = [64, 8], strides = [1, 1]} : vector<64x96xf32> to vector<64x8xf32>
    %9 = vector.shape_cast %8 : vector<64x8xf32> to vector<4x16x8xf32>
    %10 = vector.extract_strided_slice %6 {offsets = [0, 32], sizes = [64, 8], strides = [1, 1]} : vector<64x96xf32> to vector<64x8xf32>
    %11 = vector.shape_cast %10 : vector<64x8xf32> to vector<4x16x8xf32>
    %12 = vector.extract_strided_slice %6 {offsets = [0, 64], sizes = [64, 8], strides = [1, 1]} : vector<64x96xf32> to vector<64x8xf32>
    %13 = vector.shape_cast %12 : vector<64x8xf32> to vector<4x16x8xf32>
    "tpu.trace_start"() <{level = 10 : i32, message = "bqd,bkd->bqk"}> : () -> ()
    %cst_10 = arith.constant dense<0.000000e+00> : vector<4x16x16xf32>
    %14 = tpu.matmul %9, %11, %cst_10 {dimension_numbers = #tpu.dot_dimension_numbers<[2], [2], [1], [1], [0, 0, 0, 1, 1, 1], [0], [0]>} : vector<4x16x8xf32>, vector<4x16x8xf32>, vector<4x16x16xf32> -> vector<4x16x16xf32>
    "tpu.trace_stop"() : () -> ()
    %15 = vector.shape_cast %14 : vector<4x16x16xf32> to vector<4x1x16x16xf32>
    %16 = vector.extract_strided_slice %7 {offsets = [0, 0, 0, 0], sizes = [1, 1, 16, 16], strides = [1, 1, 1, 1]} : vector<4x1x16x16xf32> to vector<1x1x16x16xf32>
    %17 = vector.shape_cast %16 : vector<1x1x16x16xf32> to vector<1x16x16xf32>
    %18 = vector.shape_cast %17 : vector<1x16x16xf32> to vector<1x1x16x16xf32>
    %19 = vector.broadcast %18 : vector<1x1x16x16xf32> to vector<4x1x16x16xf32>
    %20 = arith.addf %15, %19 : vector<4x1x16x16xf32>
    %21 = vector.shape_cast %20 : vector<4x1x16x16xf32> to vector<4x16x16xf32>
    %cst_11 = arith.constant dense<0xFF800000> : vector<4x16xf32>
    %22 = vector.multi_reduction <maximumf>, %21, %cst_11 [2] : vector<4x16x16xf32> to vector<4x16xf32>
    %23 = vector.shape_cast %22 : vector<4x16xf32> to vector<4x16x1xf32>
    %24 = vector.broadcast %23 : vector<4x16x1xf32> to vector<4x16x16xf32>
    %25 = arith.subf %21, %24 : vector<4x16x16xf32>
    %26 = math.exp %25 : vector<4x16x16xf32>
    %cst_12 = arith.constant dense<0.000000e+00> : vector<4x16xf32>
    %27 = vector.multi_reduction <add>, %26, %cst_12 [2] : vector<4x16x16xf32> to vector<4x16xf32>
    %28 = vector.shape_cast %27 : vector<4x16xf32> to vector<4x16x1xf32>
    %29 = tpu.reciprocal %28 {approx = true} : vector<4x16x1xf32> -> vector<4x16x1xf32>
    "tpu.trace_start"() <{level = 10 : i32, message = "bqk,bkd->bqd"}> : () -> ()
    %cst_13 = arith.constant dense<0.000000e+00> : vector<4x16x8xf32>
    %30 = tpu.matmul %26, %13, %cst_13 {dimension_numbers = #tpu.dot_dimension_numbers<[2], [1], [1], [2], [0, 0, 0, 1, 1, 2], [0], [0]>} : vector<4x16x16xf32>, vector<4x16x8xf32>, vector<4x16x8xf32> -> vector<4x16x8xf32>
    "tpu.trace_stop"() : () -> ()
    %31 = vector.broadcast %29 : vector<4x16x1xf32> to vector<4x16x8xf32>
    %32 = arith.mulf %30, %31 : vector<4x16x8xf32>
    %33 = vector.extract_strided_slice %6 {offsets = [0, 8], sizes = [64, 8], strides = [1, 1]} : vector<64x96xf32> to vector<64x8xf32>
    %34 = vector.shape_cast %33 : vector<64x8xf32> to vector<4x16x8xf32>
    %35 = vector.extract_strided_slice %6 {offsets = [0, 40], sizes = [64, 8], strides = [1, 1]} : vector<64x96xf32> to vector<64x8xf32>
    %36 = vector.shape_cast %35 : vector<64x8xf32> to vector<4x16x8xf32>
    %37 = vector.extract_strided_slice %6 {offsets = [0, 72], sizes = [64, 8], strides = [1, 1]} : vector<64x96xf32> to vector<64x8xf32>
    %38 = vector.shape_cast %37 : vector<64x8xf32> to vector<4x16x8xf32>
    "tpu.trace_start"() <{level = 10 : i32, message = "bqd,bkd->bqk"}> : () -> ()
    %cst_14 = arith.constant dense<0.000000e+00> : vector<4x16x16xf32>
    %39 = tpu.matmul %34, %36, %cst_14 {dimension_numbers = #tpu.dot_dimension_numbers<[2], [2], [1], [1], [0, 0, 0, 1, 1, 1], [0], [0]>} : vector<4x16x8xf32>, vector<4x16x8xf32>, vector<4x16x16xf32> -> vector<4x16x16xf32>
    "tpu.trace_stop"() : () -> ()
    %40 = vector.shape_cast %39 : vector<4x16x16xf32> to vector<4x1x16x16xf32>
    %41 = vector.extract_strided_slice %7 {offsets = [1, 0, 0, 0], sizes = [1, 1, 16, 16], strides = [1, 1, 1, 1]} : vector<4x1x16x16xf32> to vector<1x1x16x16xf32>
    %42 = vector.shape_cast %41 : vector<1x1x16x16xf32> to vector<1x16x16xf32>
    %43 = vector.shape_cast %42 : vector<1x16x16xf32> to vector<1x1x16x16xf32>
    %44 = vector.broadcast %43 : vector<1x1x16x16xf32> to vector<4x1x16x16xf32>
    %45 = arith.addf %40, %44 : vector<4x1x16x16xf32>
    %46 = vector.shape_cast %45 : vector<4x1x16x16xf32> to vector<4x16x16xf32>
    %cst_15 = arith.constant dense<0xFF800000> : vector<4x16xf32>
    %47 = vector.multi_reduction <maximumf>, %46, %cst_15 [2] : vector<4x16x16xf32> to vector<4x16xf32>
    %48 = vector.shape_cast %47 : vector<4x16xf32> to vector<4x16x1xf32>
    %49 = vector.broadcast %48 : vector<4x16x1xf32> to vector<4x16x16xf32>
    %50 = arith.subf %46, %49 : vector<4x16x16xf32>
    %51 = math.exp %50 : vector<4x16x16xf32>
    %cst_16 = arith.constant dense<0.000000e+00> : vector<4x16xf32>
    %52 = vector.multi_reduction <add>, %51, %cst_16 [2] : vector<4x16x16xf32> to vector<4x16xf32>
    %53 = vector.shape_cast %52 : vector<4x16xf32> to vector<4x16x1xf32>
    %54 = tpu.reciprocal %53 {approx = true} : vector<4x16x1xf32> -> vector<4x16x1xf32>
    "tpu.trace_start"() <{level = 10 : i32, message = "bqk,bkd->bqd"}> : () -> ()
    %cst_17 = arith.constant dense<0.000000e+00> : vector<4x16x8xf32>
    %55 = tpu.matmul %51, %38, %cst_17 {dimension_numbers = #tpu.dot_dimension_numbers<[2], [1], [1], [2], [0, 0, 0, 1, 1, 2], [0], [0]>} : vector<4x16x16xf32>, vector<4x16x8xf32>, vector<4x16x8xf32> -> vector<4x16x8xf32>
    "tpu.trace_stop"() : () -> ()
    %56 = vector.broadcast %54 : vector<4x16x1xf32> to vector<4x16x8xf32>
    %57 = arith.mulf %55, %56 : vector<4x16x8xf32>
    %58 = vector.extract_strided_slice %6 {offsets = [0, 16], sizes = [64, 8], strides = [1, 1]} : vector<64x96xf32> to vector<64x8xf32>
    %59 = vector.shape_cast %58 : vector<64x8xf32> to vector<4x16x8xf32>
    %60 = vector.extract_strided_slice %6 {offsets = [0, 48], sizes = [64, 8], strides = [1, 1]} : vector<64x96xf32> to vector<64x8xf32>
    %61 = vector.shape_cast %60 : vector<64x8xf32> to vector<4x16x8xf32>
    %62 = vector.extract_strided_slice %6 {offsets = [0, 80], sizes = [64, 8], strides = [1, 1]} : vector<64x96xf32> to vector<64x8xf32>
    %63 = vector.shape_cast %62 : vector<64x8xf32> to vector<4x16x8xf32>
    "tpu.trace_start"() <{level = 10 : i32, message = "bqd,bkd->bqk"}> : () -> ()
    %cst_18 = arith.constant dense<0.000000e+00> : vector<4x16x16xf32>
    %64 = tpu.matmul %59, %61, %cst_18 {dimension_numbers = #tpu.dot_dimension_numbers<[2], [2], [1], [1], [0, 0, 0, 1, 1, 1], [0], [0]>} : vector<4x16x8xf32>, vector<4x16x8xf32>, vector<4x16x16xf32> -> vector<4x16x16xf32>
    "tpu.trace_stop"() : () -> ()
    %65 = vector.shape_cast %64 : vector<4x16x16xf32> to vector<4x1x16x16xf32>
    %66 = vector.extract_strided_slice %7 {offsets = [2, 0, 0, 0], sizes = [1, 1, 16, 16], strides = [1, 1, 1, 1]} : vector<4x1x16x16xf32> to vector<1x1x16x16xf32>
    %67 = vector.shape_cast %66 : vector<1x1x16x16xf32> to vector<1x16x16xf32>
    %68 = vector.shape_cast %67 : vector<1x16x16xf32> to vector<1x1x16x16xf32>
    %69 = vector.broadcast %68 : vector<1x1x16x16xf32> to vector<4x1x16x16xf32>
    %70 = arith.addf %65, %69 : vector<4x1x16x16xf32>
    %71 = vector.shape_cast %70 : vector<4x1x16x16xf32> to vector<4x16x16xf32>
    %cst_19 = arith.constant dense<0xFF800000> : vector<4x16xf32>
    %72 = vector.multi_reduction <maximumf>, %71, %cst_19 [2] : vector<4x16x16xf32> to vector<4x16xf32>
    %73 = vector.shape_cast %72 : vector<4x16xf32> to vector<4x16x1xf32>
    %74 = vector.broadcast %73 : vector<4x16x1xf32> to vector<4x16x16xf32>
    %75 = arith.subf %71, %74 : vector<4x16x16xf32>
    %76 = math.exp %75 : vector<4x16x16xf32>
    %cst_20 = arith.constant dense<0.000000e+00> : vector<4x16xf32>
    %77 = vector.multi_reduction <add>, %76, %cst_20 [2] : vector<4x16x16xf32> to vector<4x16xf32>
    %78 = vector.shape_cast %77 : vector<4x16xf32> to vector<4x16x1xf32>
    %79 = tpu.reciprocal %78 {approx = true} : vector<4x16x1xf32> -> vector<4x16x1xf32>
    "tpu.trace_start"() <{level = 10 : i32, message = "bqk,bkd->bqd"}> : () -> ()
    %cst_21 = arith.constant dense<0.000000e+00> : vector<4x16x8xf32>
    %80 = tpu.matmul %76, %63, %cst_21 {dimension_numbers = #tpu.dot_dimension_numbers<[2], [1], [1], [2], [0, 0, 0, 1, 1, 2], [0], [0]>} : vector<4x16x16xf32>, vector<4x16x8xf32>, vector<4x16x8xf32> -> vector<4x16x8xf32>
    "tpu.trace_stop"() : () -> ()
    %81 = vector.broadcast %79 : vector<4x16x1xf32> to vector<4x16x8xf32>
    %82 = arith.mulf %80, %81 : vector<4x16x8xf32>
    %83 = vector.extract_strided_slice %6 {offsets = [0, 24], sizes = [64, 8], strides = [1, 1]} : vector<64x96xf32> to vector<64x8xf32>
    %84 = vector.shape_cast %83 : vector<64x8xf32> to vector<4x16x8xf32>
    %85 = vector.extract_strided_slice %6 {offsets = [0, 56], sizes = [64, 8], strides = [1, 1]} : vector<64x96xf32> to vector<64x8xf32>
    %86 = vector.shape_cast %85 : vector<64x8xf32> to vector<4x16x8xf32>
    %87 = vector.extract_strided_slice %6 {offsets = [0, 88], sizes = [64, 8], strides = [1, 1]} : vector<64x96xf32> to vector<64x8xf32>
    %88 = vector.shape_cast %87 : vector<64x8xf32> to vector<4x16x8xf32>
    "tpu.trace_start"() <{level = 10 : i32, message = "bqd,bkd->bqk"}> : () -> ()
    %cst_22 = arith.constant dense<0.000000e+00> : vector<4x16x16xf32>
    %89 = tpu.matmul %84, %86, %cst_22 {dimension_numbers = #tpu.dot_dimension_numbers<[2], [2], [1], [1], [0, 0, 0, 1, 1, 1], [0], [0]>} : vector<4x16x8xf32>, vector<4x16x8xf32>, vector<4x16x16xf32> -> vector<4x16x16xf32>
    "tpu.trace_stop"() : () -> ()
    %90 = vector.shape_cast %89 : vector<4x16x16xf32> to vector<4x1x16x16xf32>
    %91 = vector.extract_strided_slice %7 {offsets = [3, 0, 0, 0], sizes = [1, 1, 16, 16], strides = [1, 1, 1, 1]} : vector<4x1x16x16xf32> to vector<1x1x16x16xf32>
    %92 = vector.shape_cast %91 : vector<1x1x16x16xf32> to vector<1x16x16xf32>
    %93 = vector.shape_cast %92 : vector<1x16x16xf32> to vector<1x1x16x16xf32>
    %94 = vector.broadcast %93 : vector<1x1x16x16xf32> to vector<4x1x16x16xf32>
    %95 = arith.addf %90, %94 : vector<4x1x16x16xf32>
    %96 = vector.shape_cast %95 : vector<4x1x16x16xf32> to vector<4x16x16xf32>
    %cst_23 = arith.constant dense<0xFF800000> : vector<4x16xf32>
    %97 = vector.multi_reduction <maximumf>, %96, %cst_23 [2] : vector<4x16x16xf32> to vector<4x16xf32>
    %98 = vector.shape_cast %97 : vector<4x16xf32> to vector<4x16x1xf32>
    %99 = vector.broadcast %98 : vector<4x16x1xf32> to vector<4x16x16xf32>
    %100 = arith.subf %96, %99 : vector<4x16x16xf32>
    %101 = math.exp %100 : vector<4x16x16xf32>
    %cst_24 = arith.constant dense<0.000000e+00> : vector<4x16xf32>
    %102 = vector.multi_reduction <add>, %101, %cst_24 [2] : vector<4x16x16xf32> to vector<4x16xf32>
    %103 = vector.shape_cast %102 : vector<4x16xf32> to vector<4x16x1xf32>
    %104 = tpu.reciprocal %103 {approx = true} : vector<4x16x1xf32> -> vector<4x16x1xf32>
    "tpu.trace_start"() <{level = 10 : i32, message = "bqk,bkd->bqd"}> : () -> ()
    %cst_25 = arith.constant dense<0.000000e+00> : vector<4x16x8xf32>
    %105 = tpu.matmul %101, %88, %cst_25 {dimension_numbers = #tpu.dot_dimension_numbers<[2], [1], [1], [2], [0, 0, 0, 1, 1, 2], [0], [0]>} : vector<4x16x16xf32>, vector<4x16x8xf32>, vector<4x16x8xf32> -> vector<4x16x8xf32>
    "tpu.trace_stop"() : () -> ()
    %106 = vector.broadcast %104 : vector<4x16x1xf32> to vector<4x16x8xf32>
    %107 = arith.mulf %105, %106 : vector<4x16x8xf32>
    %108 = tpu.concatenate %32, %57, %82, %107 in 2 : vector<4x16x8xf32>, vector<4x16x8xf32>, vector<4x16x8xf32>, vector<4x16x8xf32> -> vector<4x16x32xf32>
    %109 = vector.shape_cast %108 : vector<4x16x32xf32> to vector<64x32xf32>
    %c0_26 = arith.constant 0 : index
    %c0_27 = arith.constant 0 : index
    %110 = vector.load %arg5[%c0_26, %c0_27] : memref<32x32xf32, #tpu.memory_space<vmem>>, vector<32x32xf32>
    %cst_28 = arith.constant dense<0.000000e+00> : vector<64x32xf32>
    %111 = tpu.matmul %109, %110, %cst_28 {dimension_numbers = #tpu.dot_dimension_numbers<[1], [0], [0], [1], [0, 0, 1, 1], [], []>} : vector<64x32xf32>, vector<32x32xf32>, vector<64x32xf32> -> vector<64x32xf32>
    %c0_29 = arith.constant 0 : index
    %c0_30 = arith.constant 0 : index
    %112 = vector.load %arg6[%c0_29, %c0_30] : memref<1x32xf32, #tpu.memory_space<vmem>>, vector<1x32xf32>
    %113 = vector.broadcast %112 : vector<1x32xf32> to vector<64x32xf32>
    %114 = arith.addf %111, %113 : vector<64x32xf32>
    %115 = vector.shape_cast %114 : vector<64x32xf32> to vector<4x16x32xf32>
    %c0_31 = arith.constant 0 : index
    %c0_32 = arith.constant 0 : index
    %c0_33 = arith.constant 0 : index
    %116 = vector.load %arg7[%c0_31, %c0_32, %c0_33] : memref<4x16x32xf32, #tpu.memory_space<vmem>>, vector<4x16x32xf32>
    tpu.vector_store %arg7[%c0_31, %c0_32, %c0_33], %115 {strides = array<i32>} : memref<4x16x32xf32, #tpu.memory_space<vmem>>, vector<4x16x32xf32>,
    return
  }
  func.func @transform_0(%arg0: i32) -> (i32, i32, i32) {
    %c0_i32 = arith.constant 0 : i32
    %c0_i32_0 = arith.constant 0 : i32
    %c0_i32_1 = arith.constant 0 : i32
    return %arg0, %c0_i32, %c0_i32_0 : i32, i32, i32
  }
  func.func @transform_1(%arg0: i32) -> (i32, i32) {
    %c0_i32 = arith.constant 0 : i32
    %c0_i32_0 = arith.constant 0 : i32
    %c0_i32_1 = arith.constant 0 : i32
    return %c0_i32, %c0_i32_0 : i32, i32
  }
  func.func @transform_2(%arg0: i32) -> (i32, i32) {
    %c0_i32 = arith.constant 0 : i32
    %c0_i32_0 = arith.constant 0 : i32
    %c0_i32_1 = arith.constant 0 : i32
    return %c0_i32, %c0_i32_0 : i32, i32
  }
  func.func @transform_3(%arg0: i32) -> (i32, i32, i32, i32) {
    %c0_i32 = arith.constant 0 : i32
    %c0_i32_0 = arith.constant 0 : i32
    %c0_i32_1 = arith.constant 0 : i32
    %c0_i32_2 = arith.constant 0 : i32
    %c0_i32_3 = arith.constant 0 : i32
    return %c0_i32, %c0_i32_0, %c0_i32_1, %c0_i32_2 : i32, i32, i32, i32
  }
  func.func @transform_4(%arg0: i32) -> (i32, i32) {
    %c0_i32 = arith.constant 0 : i32
    %c0_i32_0 = arith.constant 0 : i32
    %c0_i32_1 = arith.constant 0 : i32
    return %c0_i32, %c0_i32_0 : i32, i32
  }
  func.func @transform_5(%arg0: i32) -> (i32, i32) {
    %c0_i32 = arith.constant 0 : i32
    %c0_i32_0 = arith.constant 0 : i32
    %c0_i32_1 = arith.constant 0 : i32
    return %c0_i32, %c0_i32_0 : i32, i32
  }
  func.func @transform_6(%arg0: i32) -> (i32, i32, i32) {
    %c0_i32 = arith.constant 0 : i32
    %c0_i32_0 = arith.constant 0 : i32
    %c0_i32_1 = arith.constant 0 : i32
    return %arg0, %c0_i32, %c0_i32_0 : i32, i32, i32
  }
}

</mosaic_0001>

<llo_original>
// kernel: tpu_custom_call.1
$region0: #{tpu_custom_call.1}
  #allocation0 [shape = 'u32[]', space=smem, size = 0x4, offset = 0x4, fixed_abs, tag = 'smem constant byte address 0x4 - core index']
  #allocation1 [shape = 'u32[72,128]{1,0:T(1,128)}', space=vmem, size = 0x9000, scoped, tag = 'internal scratch']
  %s0 = inlined_call_operand.hbm [shape: f32[8,16,32], index: 0, kind: input, shape index: {}]
  %s1 = inlined_call_operand.hbm [shape: f32[32,96], index: 1, kind: input, shape index: {}]
  %s2 = inlined_call_operand.vmem [shape: f32[1,96], index: 2, kind: input, shape index: {}]
  %s3 = inlined_call_operand.hbm [shape: f32[4,1,16,16], index: 3, kind: input, shape index: {}]
  %s4 = inlined_call_operand.hbm [shape: f32[32,32], index: 4, kind: input, shape index: {}]
  %s5 = inlined_call_operand.vmem [shape: f32[1,32], index: 5, kind: input, shape index: {}]
  %s6 = inlined_call_operand.hbm [shape: f32[8,16,32], index: 6, kind: output, shape index: {}]
  %s7 = sld [smem:[#allocation0]]
  $region73: #{tpu_custom_call.1} parent=0
    _
  %s9 = ssub.s32 1, %s7
  %s10 = scalar_select 0, %s9, %s7
  $region1: #{tpu_custom_call.1} parent=0
    #allocation2 [shape = 'u8[65536]{0}', space=vmem, size = 0x10000, scoped, tag = 'input window, operand 0']
    #allocation3 [shape = 's32[2]{0}', space=sflag, size = 0x8, scoped, tag = 'scoped memory for tpu_custom_call.1']
    #allocation4 [shape = 's32[2]{0}', space=sflag, size = 0x8, scoped, tag = 'scoped memory for tpu_custom_call.1']
    #allocation5 [shape = 'u8[16384]{0}', space=vmem, size = 0x4000, scoped, tag = 'input window, operand 1, single buffered']
    #allocation6 [shape = 's32[1]{0}', space=sflag, size = 0x4, scoped, tag = 'scoped memory for tpu_custom_call.1']
    #allocation7 [shape = 'u8[32768]{0}', space=vmem, size = 0x8000, scoped, tag = 'input window, operand 3, single buffered']
    #allocation8 [shape = 'u8[16384]{0}', space=vmem, size = 0x4000, scoped, tag = 'input window, operand 4, single buffered']
    #allocation9 [shape = 's32[1]{0}', space=sflag, size = 0x4, scoped, tag = 'scoped memory for tpu_custom_call.1']
    #allocation10 [shape = 'u8[65536]{0}', space=vmem, size = 0x10000, scoped, tag = 'output window, operand 0']
    %11 = vsyncpa [#allocation3], 0
    %s12 = scalar_lea.sflag [#allocation3], 1
    %13 = vsyncpa %s12, 0
    %14 = vsyncpa [#allocation6], 0
    %15 = vsyncpa [#allocation9], 0
    %16 = vsyncpa [#allocation4], 0
    %s17 = scalar_lea.sflag [#allocation4], 1
    %18 = vsyncpa %s17, 0
    loop: start=0, step=1, limit=4
    $region2: #{tpu_custom_call.1} parent=1 // loop_pre_header
      _
    $region3: #{tpu_custom_call.1} parent=1 // loop_header
      %s20 = sphi 0, %s24
      %p21 = scmp.ge.s32.totalorder %s20, 4
      %s30 = sphi 0, %s32
      %s33 = sphi 0, %s30
      %s34 = sphi 0, %s33
      %s50 = sphi 0, %s34
      %s54 = sphi 0, %s54
      %s56 = sphi 0, %s54
      %s57 = sphi 0, %s56
      %s71 = sphi 0, %s57
      %s75 = sphi 0, %s75
      %s77 = sphi 0, %s75
      %s78 = sphi 0, %s77
      %s92 = sphi 0, %s78
      %s96 = sphi 0, %s96
      %s98 = sphi 0, %s96
      %s99 = sphi 0, %s98
      %s113 = sphi 0, %s99
      %s117 = sphi 0, %s117
      %s119 = sphi 0, %s117
      %s120 = sphi 0, %s119
      %s134 = sphi 0, %s120
      %s138 = sphi 0, %s138
      %s140 = sphi 0, %s138
      %s141 = sphi 0, %s140
      %s155 = sphi 0, %s141
      %s161 = sphi 0, %s163
      %s164 = sphi 0, %s161
      %s165 = sphi 0, %s164
      %s181 = sphi 0, %s165
    $region4: #{tpu_custom_call.1} parent=1 // loop_header_branch
      %23 = sbr.rel (%p21) target = $region8
    $region5: #{tpu_custom_call.1} parent=1 // loop_body
      %s25 = ssub.s32 %s20, 1
      %s26 = ssub.s32 %s20, 2
      %s27 = sadd.s32 %s20, 1
      %s28 = ssub.s32 %s20, %s27
      %p29 = scmp.eq.s32.totalorder %s28, 0
      %s31 = sadd.s32 %s30, 1
      %s32 = scalar_select %p29, %s30, %s31
      %p35 = pneg %p29
      %p36 = scmp.eq.s32.totalorder %s20, 1
      %p37 = por %p35, %p36
      %p38 = scmp.ne.s32.totalorder %s30, %s33
      %p39 = scmp.eq.s32.totalorder %s20, 0
      %p40 = por %p38, %p39
      %p41 = scmp.ne.s32.totalorder %s30, %s33
      %p42 = scmp.eq.s32.totalorder %s25, 1
      %p43 = por %p41, %p42
      %p44 = scmp.ne.s32.totalorder %s33, %s34
      %p45 = scmp.eq.s32.totalorder %s25, 0
      %p46 = por %p44, %p45
      %p47 = scmp.ne.s32.totalorder %s33, %s34
      %p48 = scmp.eq.s32.totalorder %s26, 1
      %p49 = por %p47, %p48
      %p51 = scmp.ne.s32.totalorder %s34, %s50
      %p52 = scmp.eq.s32.totalorder %s26, 0
      %p53 = por %p51, %p52
      %s55 = sadd.s32 %s54, 1
      %p58 = scmp.eq.s32.totalorder %s20, 1
      %p59 = scmp.ne.s32.totalorder %s54, %s56
      %p60 = scmp.eq.s32.totalorder %s20, 0
      %p61 = por %p59, %p60
      %p62 = scmp.ne.s32.totalorder %s54, %s56
      %p63 = scmp.eq.s32.totalorder %s25, 1
      %p64 = por %p62, %p63
      %p65 = scmp.ne.s32.totalorder %s56, %s57
      %p66 = scmp.eq.s32.totalorder %s25, 0
      %p67 = por %p65, %p66
      %p68 = scmp.ne.s32.totalorder %s56, %s57
      %p69 = scmp.eq.s32.totalorder %s26, 1
      %p70 = por %p68, %p69
      %p72 = scmp.ne.s32.totalorder %s57, %s71
      %p73 = scmp.eq.s32.totalorder %s26, 0
      %p74 = por %p72, %p73
      %s76 = sadd.s32 %s75, 1
      %p79 = scmp.eq.s32.totalorder %s20, 1
      %p80 = scmp.ne.s32.totalorder %s75, %s77
      %p81 = scmp.eq.s32.totalorder %s20, 0
      %p82 = por %p80, %p81
      %p83 = scmp.ne.s32.totalorder %s75, %s77
      %p84 = scmp.eq.s32.totalorder %s25, 1
      %p85 = por %p83, %p84
      %p86 = scmp.ne.s32.totalorder %s77, %s78
      %p87 = scmp.eq.s32.totalorder %s25, 0
      %p88 = por %p86, %p87
      %p89 = scmp.ne.s32.totalorder %s77, %s78
      %p90 = scmp.eq.s32.totalorder %s26, 1
      %p91 = por %p89, %p90
      %p93 = scmp.ne.s32.totalorder %s78, %s92
      %p94 = scmp.eq.s32.totalorder %s26, 0
      %p95 = por %p93, %p94
      %s97 = sadd.s32 %s96, 1
      %p100 = scmp.eq.s32.totalorder %s20, 1
      %p101 = scmp.ne.s32.totalorder %s96, %s98
      %p102 = scmp.eq.s32.totalorder %s20, 0
      %p103 = por %p101, %p102
      %p104 = scmp.ne.s32.totalorder %s96, %s98
      %p105 = scmp.eq.s32.totalorder %s25, 1
      %p106 = por %p104, %p105
      %p107 = scmp.ne.s32.totalorder %s98, %s99
      %p108 = scmp.eq.s32.totalorder %s25, 0
      %p109 = por %p107, %p108
      %p110 = scmp.ne.s32.totalorder %s98, %s99
      %p111 = scmp.eq.s32.totalorder %s26, 1
      %p112 = por %p110, %p111
      %p114 = scmp.ne.s32.totalorder %s99, %s113
      %p115 = scmp.eq.s32.totalorder %s26, 0
      %p116 = por %p114, %p115
      %s118 = sadd.s32 %s117, 1
      %p121 = scmp.eq.s32.totalorder %s20, 1
      %p122 = scmp.ne.s32.totalorder %s117, %s119
      %p123 = scmp.eq.s32.totalorder %s20, 0
      %p124 = por %p122, %p123
      %p125 = scmp.ne.s32.totalorder %s117, %s119
      %p126 = scmp.eq.s32.totalorder %s25, 1
      %p127 = por %p125, %p126
      %p128 = scmp.ne.s32.totalorder %s119, %s120
      %p129 = scmp.eq.s32.totalorder %s25, 0
      %p130 = por %p128, %p129
      %p131 = scmp.ne.s32.totalorder %s119, %s120
      %p132 = scmp.eq.s32.totalorder %s26, 1
      %p133 = por %p131, %p132
      %p135 = scmp.ne.s32.totalorder %s120, %s134
      %p136 = scmp.eq.s32.totalorder %s26, 0
      %p137 = por %p135, %p136
      %s139 = sadd.s32 %s138, 1
      %p142 = scmp.eq.s32.totalorder %s20, 1
      %p143 = scmp.ne.s32.totalorder %s138, %s140
      %p144 = scmp.eq.s32.totalorder %s20, 0
      %p145 = por %p143, %p144
      %p146 = scmp.ne.s32.totalorder %s138, %s140
      %p147 = scmp.eq.s32.totalorder %s25, 1
      %p148 = por %p146, %p147
      %p149 = scmp.ne.s32.totalorder %s140, %s141
      %p150 = scmp.eq.s32.totalorder %s25, 0
      %p151 = por %p149, %p150
      %p152 = scmp.ne.s32.totalorder %s140, %s141
      %p153 = scmp.eq.s32.totalorder %s26, 1
      %p154 = por %p152, %p153
      %p156 = scmp.ne.s32.totalorder %s141, %s155
      %p157 = scmp.eq.s32.totalorder %s26, 0
      %p158 = por %p156, %p157
      %s159 = ssub.s32 %s20, %s27
      %p160 = scmp.eq.s32.totalorder %s159, 0
      %s162 = sadd.s32 %s161, 1
      %s163 = scalar_select %p160, %s161, %s162
      %p166 = pneg %p160
      %p167 = scmp.eq.s32.totalorder %s20, 1
      %p168 = por %p166, %p167
      %p169 = scmp.ne.s32.totalorder %s161, %s164
      %p170 = scmp.eq.s32.totalorder %s20, 0
      %p171 = por %p169, %p170
      %p172 = scmp.ne.s32.totalorder %s161, %s164
      %p173 = scmp.eq.s32.totalorder %s25, 1
      %p174 = por %p172, %p173
      %p175 = scmp.ne.s32.totalorder %s164, %s165
      %p176 = scmp.eq.s32.totalorder %s25, 0
      %p177 = por %p175, %p176
      %p178 = scmp.ne.s32.totalorder %s164, %s165
      %p179 = scmp.eq.s32.totalorder %s26, 1
      %p180 = por %p178, %p179
      %p182 = scmp.ne.s32.totalorder %s165, %s181
      %p183 = scmp.eq.s32.totalorder %s26, 0
      %p184 = por %p182, %p183
      %p185 = scmp.le.s32.totalorder 1, %s20
      %p186 = scmp.lt.s32.totalorder %s20, 3
      %p187 = pnand %p185, %p186
      %p188 = pneg %p187
      // Predicated region
      $region9: #{tpu_custom_call.1} parent=5 // pred_check
        _
      $region10: #{tpu_custom_call.1} parent=5 // pred_check_branch
        %190 = sbr.rel (%p187) target = $region12
      $region11: #{tpu_custom_call.1} parent=5 // pred_region
        %s191 = ssub.s32 %s20, 1
        // Predicated region
        $region13: #{tpu_custom_call.1} parent=11 // pred_check
          %p192 = pneg %p67
        $region14: #{tpu_custom_call.1} parent=11 // pred_check_branch
          %194 = sbr.rel (%p192) target = $region16
        $region15: #{tpu_custom_call.1} parent=11 // pred_region
          %196 = vsyncadd [#allocation6], 0
          %s197 = sshll.u32 %s1, 4
          %s198 = int_to_ptr.hbm [resolvable:$true] %s197
          %s199 = sshll.u32 [#allocation5], 4
          %s200 = int_to_ptr.vmem [resolvable:$true] %s199
          %205 = dma.hbm_to_vmem [thread:$0]  %s198, 512, %s200, [#allocation6], 128, 128, 8
        $region16: #{tpu_custom_call.1} parent=11 // pred_fallthru
          _
        // Predicated region
        $region17: #{tpu_custom_call.1} parent=11 // pred_check
          %p206 = pneg %p88
        $region18: #{tpu_custom_call.1} parent=11 // pred_check_branch
          %208 = sbr.rel (%p206) target = $region20
        $region19: #{tpu_custom_call.1} parent=11 // pred_region
          _
        $region20: #{tpu_custom_call.1} parent=11 // pred_fallthru
          _
        // Predicated region
        $region21: #{tpu_custom_call.1} parent=11 // pred_check
          %p209 = pneg %p109
        $region22: #{tpu_custom_call.1} parent=11 // pred_check_branch
          %211 = sbr.rel (%p209) target = $region24
        $region23: #{tpu_custom_call.1} parent=11 // pred_region
          %213 = vsyncadd [#allocation6], 0
          %s214 = sshll.u32 %s3, 4
          %s215 = int_to_ptr.hbm [resolvable:$true] %s214
          %s216 = sshll.u32 [#allocation7], 4
          %s217 = int_to_ptr.vmem [resolvable:$true] %s216
          %222 = dma.hbm_to_vmem [thread:$0]  %s215, 1024, %s217, [#allocation6], 128, 128, 8
        $region24: #{tpu_custom_call.1} parent=11 // pred_fallthru
          _
        // Predicated region
        $region25: #{tpu_custom_call.1} parent=11 // pred_check
          %p223 = pneg %p130
        $region26: #{tpu_custom_call.1} parent=11 // pred_check_branch
          %225 = sbr.rel (%p223) target = $region28
        $region27: #{tpu_custom_call.1} parent=11 // pred_region
          %227 = vsyncadd [#allocation9], 0
          %s228 = sshll.u32 %s4, 4
          %s229 = int_to_ptr.hbm [resolvable:$true] %s228
          %s230 = sshll.u32 [#allocation8], 4
          %s231 = int_to_ptr.vmem [resolvable:$true] %s230
          %236 = dma.hbm_to_vmem [thread:$0]  %s229, 512, %s231, [#allocation9], 128, 128, 8
        $region28: #{tpu_custom_call.1} parent=11 // pred_fallthru
          _
        // Predicated region
        $region29: #{tpu_custom_call.1} parent=11 // pred_check
          %p237 = pneg %p151
        $region30: #{tpu_custom_call.1} parent=11 // pred_check_branch
          %239 = sbr.rel (%p237) target = $region32
        $region31: #{tpu_custom_call.1} parent=11 // pred_region
          _
        $region32: #{tpu_custom_call.1} parent=11 // pred_fallthru
          _
      $region12: #{tpu_custom_call.1} parent=5 // pred_fallthru
        _
      %p240 = scmp.lt.s32.totalorder %s20, 2
      // Predicated region
      $region33: #{tpu_custom_call.1} parent=5 // pred_check
        %p241 = pneg %p240
      $region34: #{tpu_custom_call.1} parent=5 // pred_check_branch
        %243 = sbr.rel (%p241) target = $region36
      $region35: #{tpu_custom_call.1} parent=5 // pred_region
        // Predicated region
        $region37: #{tpu_custom_call.1} parent=35 // pred_check
          %p244 = pneg %p40
        $region38: #{tpu_custom_call.1} parent=35 // pred_check_branch
          %246 = sbr.rel (%p244) target = $region40
        $region39: #{tpu_custom_call.1} parent=35 // pred_region
          %s247 = sand.u32 %s30, 1
          %s248 = scalar_lea.sflag [#allocation3], %s247
          %s249 = sand.u32 %s30, 1
          %s250 = smul.addr %s249, 64
          %s251 = scalar_lea.vmem [#allocation2], %s250
          %s252 = smul.u32 4, %s20
          %254 = vsyncadd %s248, 0
          %s255 = smul.addr %s252, 2
          %s256 = smul.addr %s255, 8
          %s257 = scalar_lea.hbm %s0, %s256
          %s258 = sshll.u32 %s257, 4
          %s259 = int_to_ptr.hbm [resolvable:$true] %s258
          %s260 = sshll.u32 %s251, 4
          %s261 = int_to_ptr.vmem [resolvable:$true] %s260
          %266 = dma.hbm_to_vmem [thread:$0]  %s259, 1024, %s261, %s248, 128, 128, 8
        $region40: #{tpu_custom_call.1} parent=35 // pred_fallthru
          _
      $region36: #{tpu_custom_call.1} parent=5 // pred_fallthru
        _
      %p267 = scmp.le.s32.totalorder 1, %s20
      %p268 = scmp.lt.s32.totalorder %s20, 3
      %p269 = pnand %p267, %p268
      %p270 = pneg %p269
      // Predicated region
      $region41: #{tpu_custom_call.1} parent=5 // pred_check
        _
      $region42: #{tpu_custom_call.1} parent=5 // pred_check_branch
        %272 = sbr.rel (%p269) target = $region44
      $region43: #{tpu_custom_call.1} parent=5 // pred_region
        %s273 = ssub.s32 %s20, 1
        %s274 = sand.u32 %s33, 1
        %s275 = scalar_lea.sflag [#allocation3], %s274
        %s276 = sand.u32 %s33, 1
        %s277 = smul.addr %s276, 64
        %s278 = scalar_lea.vmem [#allocation2], %s277
        // Predicated region
        $region45: #{tpu_custom_call.1} parent=43 // pred_check
          %p279 = pneg %p46
        $region46: #{tpu_custom_call.1} parent=43 // pred_check_branch
          %281 = sbr.rel (%p279) target = $region48
        $region47: #{tpu_custom_call.1} parent=43 // pred_region
          %283 = dma.done %s275, 1024
        $region48: #{tpu_custom_call.1} parent=43 // pred_fallthru
          _
        // Predicated region
        $region49: #{tpu_custom_call.1} parent=43 // pred_check
          %p284 = pneg %p67
        $region50: #{tpu_custom_call.1} parent=43 // pred_check_branch
          %286 = sbr.rel (%p284) target = $region52
        $region51: #{tpu_custom_call.1} parent=43 // pred_region
          %288 = dma.done [#allocation6], 512
        $region52: #{tpu_custom_call.1} parent=43 // pred_fallthru
          _
        // Predicated region
        $region53: #{tpu_custom_call.1} parent=43 // pred_check
          %p289 = pneg %p109
        $region54: #{tpu_custom_call.1} parent=43 // pred_check_branch
          %291 = sbr.rel (%p289) target = $region56
        $region55: #{tpu_custom_call.1} parent=43 // pred_region
          %293 = dma.done [#allocation6], 1024
        $region56: #{tpu_custom_call.1} parent=43 // pred_fallthru
          _
        // Predicated region
        $region57: #{tpu_custom_call.1} parent=43 // pred_check
          %p294 = pneg %p130
        $region58: #{tpu_custom_call.1} parent=43 // pred_check_branch
          %296 = sbr.rel (%p294) target = $region60
        $region59: #{tpu_custom_call.1} parent=43 // pred_region
          %298 = dma.done [#allocation9], 512
        $region60: #{tpu_custom_call.1} parent=43 // pred_fallthru
          _
        %s299 = sand.u32 %s33, 1
        %s300 = scalar_lea.sflag [#allocation3], %s299
        %s301 = sand.u32 %s33, 1
        %s302 = smul.addr %s301, 64
        %s303 = scalar_lea.vmem [#allocation2], %s302
        %p304 = pneg %p46
        %p305 = pneg %p43
        %p306 = pneg %p67
        %p307 = pneg %p64
        %p308 = pneg %p88
        %p309 = pneg %p85
        %p310 = pneg %p109
        %p311 = pneg %p106
        %p312 = pneg %p130
        %p313 = pneg %p127
        %p314 = pneg %p151
        %p315 = pneg %p148
        %p316 = pneg %p177
        %p317 = pneg %p174
        %s318 = sand.u32 %s164, 1
        %s319 = scalar_lea.sflag [#allocation4], %s318
        %s320 = sand.u32 %s164, 1
        %s321 = smul.addr %s320, 64
        %s322 = scalar_lea.vmem [#allocation10], %s321
        %s323 = smul.u32 4, %s25
        %s324 = smul.u32 4, %s25
        %v325 = vld [vmem:[%s278] sm:$0xff]
        %v326 = vld [vmem:[%s278 + $0x8] sm:$0xff]
        %v327 = vld [vmem:[%s278 + $0x10] sm:$0xff]
        %v328 = vld [vmem:[%s278 + $0x18] sm:$0xff]
        %v329 = vld [vmem:[%s278 + $0x20] sm:$0xff]
        %v330 = vld [vmem:[%s278 + $0x28] sm:$0xff]
        %v331 = vld [vmem:[%s278 + $0x30] sm:$0xff]
        %v332 = vld [vmem:[%s278 + $0x38] sm:$0xff]
        %v333 = vld [vmem:[#allocation5] sm:$0xff]
        %v334 = vld [vmem:[#allocation5 + $0x8] sm:$0xff]
        %v335 = vld [vmem:[#allocation5 + $0x10] sm:$0xff]
        %v336 = vld [vmem:[#allocation5 + $0x18] sm:$0xff]
        %v337 = vld [vmem:[%s2] sm:$0x1]
        %v339 = vperm.slane %v337, 0
        %vm341 = vcmask 261120
        %v343 = vsel %vm341, %v325, 0
        %v346 = vsel %vm341, %v326, 0
        %v349 = vsel %vm341, %v327, 0
        %v352 = vsel %vm341, %v328, 0
        %v355 = vsel %vm341, %v329, 0
        %v358 = vsel %vm341, %v330, 0
        %v361 = vsel %vm341, %v331, 0
        %v364 = vsel %vm341, %v332, 0
        %366 = vmatpush.msra.mxu0 0.0
        %367 = vmatpush.msra.mxu0 0.0
        %368 = vmatpush.msra.mxu0 0.0
        %369 = vmatpush.msra.mxu0 0.0
        %370 = vmatpush.msra.mxu0 0.0
        %371 = vmatpush.msra.mxu0 0.0
        %372 = vmatpush.msra.mxu0 0.0
        %373 = vmatpush.msra.mxu0 0.0
        %374 = vmatpush.msra.mxu0 0.0
        %375 = vmatpush.msra.mxu0 0.0
        %376 = vmatpush.msra.mxu0 0.0
        %377 = vmatpush.msra.mxu0 0.0
        %378 = vmatpush.msra.mxu0 %v336
        %379 = vmatpush.msra.mxu0 %v335
        %380 = vmatpush.msra.mxu0 %v334
        %381 = vmatpush.msra.mxu0 %v333
        %382 = vmatmul.f32.gmra.mxu0 %v343
        %v383 = vpop.f32.mrf.mxu0
        %v384 = vadd.f32 %v339, %v383
        %385 = vmatmul.f32.gmra.mxu0 %v346
        %v386 = vpop.f32.mrf.mxu0
        %v387 = vadd.f32 %v339, %v386
        %388 = vmatmul.f32.gmra.mxu0 %v349
        %v389 = vpop.f32.mrf.mxu0
        %v390 = vadd.f32 %v339, %v389
        %391 = vmatmul.f32.gmra.mxu0 %v352
        %v392 = vpop.f32.mrf.mxu0
        %v393 = vadd.f32 %v339, %v392
        %394 = vmatmul.f32.gmra.mxu0 %v355
        %v395 = vpop.f32.mrf.mxu0
        %v396 = vadd.f32 %v339, %v395
        %397 = vmatmul.f32.gmra.mxu0 %v358
        %v398 = vpop.f32.mrf.mxu0
        %v399 = vadd.f32 %v339, %v398
        %400 = vmatmul.f32.gmra.mxu0 %v361
        %v401 = vpop.f32.mrf.mxu0
        %v402 = vadd.f32 %v339, %v401
        %403 = vmatmul.f32.gmra.mxu0 %v364
        %v404 = vpop.f32.mrf.mxu0
        %v405 = vadd.f32 %v339, %v404
        %406 = vdwg.mxu0
        %v407 = vld [vmem:[#allocation7] sm:$0xff]
        %v408 = vld [vmem:[#allocation7 + $0x8] sm:$0xff]
        %v409 = vld [vmem:[#allocation7 + $0x10] sm:$0xff]
        %v410 = vld [vmem:[#allocation7 + $0x18] sm:$0xff]
        %v411 = vld [vmem:[#allocation7 + $0x20] sm:$0xff]
        %v412 = vld [vmem:[#allocation7 + $0x28] sm:$0xff]
        %v413 = vld [vmem:[#allocation7 + $0x30] sm:$0xff]
        %v414 = vld [vmem:[#allocation7 + $0x38] sm:$0xff]
        %417 = vrot.lane.b32.xlu0 %v384, 96
        %v418 = vpop.permute.xlu0 %417
        %419 = vrot.lane.b32.xlu0 %v387, 96
        %v420 = vpop.permute.xlu0 %419
        %vm421 = vcmask 64512
        %v422 = vsel %vm421, %v384, 0
        %v424 = vsel %vm421, %v387, 0
        %v426 = vsel %vm421, %v418, 0
        %v428 = vsel %vm421, %v420, 0
        %430 = vmatpush.xpose.msra.mxu0 0.0
        %431 = vmatpush.xpose.msra.mxu0 0.0
        %432 = vmatpush.xpose.msra.mxu0 0.0
        %433 = vmatpush.xpose.msra.mxu0 0.0
        %434 = vmatpush.xpose.msra.mxu0 0.0
        %435 = vmatpush.xpose.msra.mxu0 0.0
        %436 = vmatpush.xpose.msra.mxu0 0.0
        %437 = vmatpush.xpose.msra.mxu0 0.0
        %438 = vmatpush.xpose.msra.mxu0 0.0
        %439 = vmatpush.xpose.msra.mxu0 0.0
        %440 = vmatpush.xpose.msra.mxu0 0.0
        %441 = vmatpush.xpose.msra.mxu0 0.0
        %442 = vmatpush.xpose.msra.mxu0 0.0
        %443 = vmatpush.xpose.msra.mxu0 0.0
        %444 = vmatpush.xpose.msra.mxu0 %v428
        %445 = vmatpush.xpose.msra.mxu0 %v426
        %446 = vmatmul.f32.gmra.mxu0 %v422
        %v447 = vpop.f32.mrf.mxu0
        %v448 = vadd.f32 0.0, %v447
        %449 = vmatmul.f32.gmra.mxu0 %v424
        %v450 = vpop.f32.mrf.mxu0
        %v451 = vadd.f32 0.0, %v450
        %452 = vdwg.mxu0
        %455 = vrot.lane.b32.xlu0 %v390, 96
        %v456 = vpop.permute.xlu0 %455
        %457 = vrot.lane.b32.xlu0 %v393, 96
        %v458 = vpop.permute.xlu0 %457
        %v459 = vsel %vm421, %v390, 0
        %v461 = vsel %vm421, %v393, 0
        %v463 = vsel %vm421, %v456, 0
        %v465 = vsel %vm421, %v458, 0
        %467 = vmatpush.xpose.msra.mxu0 0.0
        %468 = vmatpush.xpose.msra.mxu0 0.0
        %469 = vmatpush.xpose.msra.mxu0 0.0
        %470 = vmatpush.xpose.msra.mxu0 0.0
        %471 = vmatpush.xpose.msra.mxu0 0.0
        %472 = vmatpush.xpose.msra.mxu0 0.0
        %473 = vmatpush.xpose.msra.mxu0 0.0
        %474 = vmatpush.xpose.msra.mxu0 0.0
        %475 = vmatpush.xpose.msra.mxu0 0.0
        %476 = vmatpush.xpose.msra.mxu0 0.0
        %477 = vmatpush.xpose.msra.mxu0 0.0
        %478 = vmatpush.xpose.msra.mxu0 0.0
        %479 = vmatpush.xpose.msra.mxu0 0.0
        %480 = vmatpush.xpose.msra.mxu0 0.0
        %481 = vmatpush.xpose.msra.mxu0 %v465
        %482 = vmatpush.xpose.msra.mxu0 %v463
        %483 = vmatmul.f32.gmra.mxu0 %v459
        %v484 = vpop.f32.mrf.mxu0
        %v485 = vadd.f32 0.0, %v484
        %486 = vmatmul.f32.gmra.mxu0 %v461
        %v487 = vpop.f32.mrf.mxu0
        %v488 = vadd.f32 0.0, %v487
        %489 = vdwg.mxu0
        %492 = vrot.lane.b32.xlu0 %v396, 96
        %v493 = vpop.permute.xlu0 %492
        %494 = vrot.lane.b32.xlu0 %v399, 96
        %v495 = vpop.permute.xlu0 %494
        %v496 = vsel %vm421, %v396, 0
        %v498 = vsel %vm421, %v399, 0
        %v500 = vsel %vm421, %v493, 0
        %v502 = vsel %vm421, %v495, 0
        %504 = vmatpush.xpose.msra.mxu0 0.0
        %505 = vmatpush.xpose.msra.mxu0 0.0
        %506 = vmatpush.xpose.msra.mxu0 0.0
        %507 = vmatpush.xpose.msra.mxu0 0.0
        %508 = vmatpush.xpose.msra.mxu0 0.0
        %509 = vmatpush.xpose.msra.mxu0 0.0
        %510 = vmatpush.xpose.msra.mxu0 0.0
        %511 = vmatpush.xpose.msra.mxu0 0.0
        %512 = vmatpush.xpose.msra.mxu0 0.0
        %513 = vmatpush.xpose.msra.mxu0 0.0
        %514 = vmatpush.xpose.msra.mxu0 0.0
        %515 = vmatpush.xpose.msra.mxu0 0.0
        %516 = vmatpush.xpose.msra.mxu0 0.0
        %517 = vmatpush.xpose.msra.mxu0 0.0
        %518 = vmatpush.xpose.msra.mxu0 %v502
        %519 = vmatpush.xpose.msra.mxu0 %v500
        %520 = vmatmul.f32.gmra.mxu0 %v496
        %v521 = vpop.f32.mrf.mxu0
        %v522 = vadd.f32 0.0, %v521
        %523 = vmatmul.f32.gmra.mxu0 %v498
        %v524 = vpop.f32.mrf.mxu0
        %v525 = vadd.f32 0.0, %v524
        %526 = vdwg.mxu0
        %529 = vrot.lane.b32.xlu0 %v402, 96
        %v530 = vpop.permute.xlu0 %529
        %531 = vrot.lane.b32.xlu0 %v405, 96
        %v532 = vpop.permute.xlu0 %531
        %v533 = vsel %vm421, %v402, 0
        %v535 = vsel %vm421, %v405, 0
        %v537 = vsel %vm421, %v530, 0
        %v539 = vsel %vm421, %v532, 0
        %541 = vmatpush.xpose.msra.mxu0 0.0
        %542 = vmatpush.xpose.msra.mxu0 0.0
        %543 = vmatpush.xpose.msra.mxu0 0.0
        %544 = vmatpush.xpose.msra.mxu0 0.0
        %545 = vmatpush.xpose.msra.mxu0 0.0
        %546 = vmatpush.xpose.msra.mxu0 0.0
        %547 = vmatpush.xpose.msra.mxu0 0.0
        %548 = vmatpush.xpose.msra.mxu0 0.0
        %549 = vmatpush.xpose.msra.mxu0 0.0
        %550 = vmatpush.xpose.msra.mxu0 0.0
        %551 = vmatpush.xpose.msra.mxu0 0.0
        %552 = vmatpush.xpose.msra.mxu0 0.0
        %553 = vmatpush.xpose.msra.mxu0 0.0
        %554 = vmatpush.xpose.msra.mxu0 0.0
        %555 = vmatpush.xpose.msra.mxu0 %v539
        %556 = vmatpush.xpose.msra.mxu0 %v537
        %557 = vmatmul.f32.gmra.mxu0 %v533
        %v558 = vpop.f32.mrf.mxu0
        %v559 = vadd.f32 0.0, %v558
        %560 = vmatmul.f32.gmra.mxu0 %v535
        %v561 = vpop.f32.mrf.mxu0
        %v562 = vadd.f32 0.0, %v561
        %563 = vdwg.mxu0
        %v564 = vadd.f32 %v448, %v407
        %v565 = vadd.f32 %v451, %v408
        %v566 = vadd.f32 %v485, %v407
        %v567 = vadd.f32 %v488, %v408
        %v568 = vadd.f32 %v522, %v407
        %v569 = vadd.f32 %v525, %v408
        %v570 = vadd.f32 %v559, %v407
        %v571 = vadd.f32 %v562, %v408
        %vm572 = vcmask 130048
        %v573 = vsel %vm572, %v564, -inf
        %574 = vmax.xlane.f32.xlu0 %v573
        %v575 = vpop.xlane.xlu0 %574
        %v576 = vsel %vm572, %v565, -inf
        %577 = vmax.xlane.f32.xlu0 %v576
        %v578 = vpop.xlane.xlu0 %577
        %v579 = vsel %vm572, %v566, -inf
        %580 = vmax.xlane.f32.xlu0 %v579
        %v581 = vpop.xlane.xlu0 %580
        %v582 = vsel %vm572, %v567, -inf
        %583 = vmax.xlane.f32.xlu0 %v582
        %v584 = vpop.xlane.xlu0 %583
        %v585 = vsel %vm572, %v568, -inf
        %586 = vmax.xlane.f32.xlu0 %v585
        %v587 = vpop.xlane.xlu0 %586
        %v588 = vsel %vm572, %v569, -inf
        %589 = vmax.xlane.f32.xlu0 %v588
        %v590 = vpop.xlane.xlu0 %589
        %v591 = vsel %vm572, %v570, -inf
        %592 = vmax.xlane.f32.xlu0 %v591
        %v593 = vpop.xlane.xlu0 %592
        %v594 = vsel %vm572, %v571, -inf
        %595 = vmax.xlane.f32.xlu0 %v594
        %v596 = vpop.xlane.xlu0 %595
        %v597 = vsub.f32 %v564, %v575
        %v598 = vsub.f32 %v565, %v578
        %v599 = vsub.f32 %v566, %v581
        %v600 = vsub.f32 %v567, %v584
        %v601 = vsub.f32 %v568, %v587
        %v602 = vsub.f32 %v569, %v590
        %v603 = vsub.f32 %v570, %v593
        %v604 = vsub.f32 %v571, %v596
        %v605 = vmul.f32 %v597, 1.442695
        %v606 = vpow.pop %v605
        %v607 = vmul.f32 %v598, 1.442695
        %v608 = vpow.pop %v607
        %v609 = vmul.f32 %v599, 1.442695
        %v610 = vpow.pop %v609
        %v611 = vmul.f32 %v600, 1.442695
        %v612 = vpow.pop %v611
        %v613 = vmul.f32 %v601, 1.442695
        %v614 = vpow.pop %v613
        %v615 = vmul.f32 %v602, 1.442695
        %v616 = vpow.pop %v615
        %v617 = vmul.f32 %v603, 1.442695
        %v618 = vpow.pop %v617
        %v619 = vmul.f32 %v604, 1.442695
        %v620 = vpow.pop %v619
        %v621 = vsel %vm572, %v606, 0.0
        %622 = vadd.xlane.f32.xlu0 %v621
        %v623 = vpop.xlane.xlu0 %622
        %v624 = vsel %vm572, %v608, 0.0
        %625 = vadd.xlane.f32.xlu0 %v624
        %v626 = vpop.xlane.xlu0 %625
        %v627 = vsel %vm572, %v610, 0.0
        %628 = vadd.xlane.f32.xlu0 %v627
        %v629 = vpop.xlane.xlu0 %628
        %v630 = vsel %vm572, %v612, 0.0
        %631 = vadd.xlane.f32.xlu0 %v630
        %v632 = vpop.xlane.xlu0 %631
        %v633 = vsel %vm572, %v614, 0.0
        %634 = vadd.xlane.f32.xlu0 %v633
        %v635 = vpop.xlane.xlu0 %634
        %v636 = vsel %vm572, %v616, 0.0
        %637 = vadd.xlane.f32.xlu0 %v636
        %v638 = vpop.xlane.xlu0 %637
        %v639 = vsel %vm572, %v618, 0.0
        %640 = vadd.xlane.f32.xlu0 %v639
        %v641 = vpop.xlane.xlu0 %640
        %v642 = vsel %vm572, %v620, 0.0
        %643 = vadd.xlane.f32.xlu0 %v642
        %v644 = vpop.xlane.xlu0 %643
        %v645 = vrcp.pop %v623
        %v646 = vrcp.pop %v626
        %v647 = vrcp.pop %v629
        %v648 = vrcp.pop %v632
        %v649 = vrcp.pop %v635
        %v650 = vrcp.pop %v638
        %v651 = vrcp.pop %v641
        %v652 = vrcp.pop %v644
        %653 = vrot.lane.b32.xlu0 %v384, 64
        %v654 = vpop.permute.xlu0 %653
        %655 = vrot.lane.b32.xlu0 %v387, 64
        %v656 = vpop.permute.xlu0 %655
        %v660 = vsel %vm572, %v606, 0
        %v663 = vsel %vm572, %v608, 0
        %665 = vmatpush.msra.mxu0 0.0
        %666 = vmatpush.msra.mxu0 0.0
        %667 = vmatpush.msra.mxu0 0.0
        %668 = vmatpush.msra.mxu0 0.0
        %669 = vmatpush.msra.mxu0 0.0
        %670 = vmatpush.msra.mxu0 0.0
        %671 = vmatpush.msra.mxu0 0.0
        %672 = vmatpush.msra.mxu0 0.0
        %673 = vmatpush.msra.mxu0 0.0
        %674 = vmatpush.msra.mxu0 0.0
        %675 = vmatpush.msra.mxu0 0.0
        %676 = vmatpush.msra.mxu0 0.0
        %677 = vmatpush.msra.mxu0 0.0
        %678 = vmatpush.msra.mxu0 0.0
        %679 = vmatpush.msra.mxu0 %v656
        %680 = vmatpush.msra.mxu0 %v654
        %681 = vmatmul.f32.gmra.mxu0 %v660
        %v682 = vpop.f32.mrf.mxu0
        %v683 = vadd.f32 0.0, %v682
        %684 = vmatmul.f32.gmra.mxu0 %v663
        %v685 = vpop.f32.mrf.mxu0
        %v686 = vadd.f32 0.0, %v685
        %687 = vdwg.mxu0
        %688 = vrot.lane.b32.xlu0 %v390, 64
        %v689 = vpop.permute.xlu0 %688
        %690 = vrot.lane.b32.xlu0 %v393, 64
        %v691 = vpop.permute.xlu0 %690
        %v695 = vsel %vm572, %v610, 0
        %v698 = vsel %vm572, %v612, 0
        %700 = vmatpush.msra.mxu0 0.0
        %701 = vmatpush.msra.mxu0 0.0
        %702 = vmatpush.msra.mxu0 0.0
        %703 = vmatpush.msra.mxu0 0.0
        %704 = vmatpush.msra.mxu0 0.0
        %705 = vmatpush.msra.mxu0 0.0
        %706 = vmatpush.msra.mxu0 0.0
        %707 = vmatpush.msra.mxu0 0.0
        %708 = vmatpush.msra.mxu0 0.0
        %709 = vmatpush.msra.mxu0 0.0
        %710 = vmatpush.msra.mxu0 0.0
        %711 = vmatpush.msra.mxu0 0.0
        %712 = vmatpush.msra.mxu0 0.0
        %713 = vmatpush.msra.mxu0 0.0
        %714 = vmatpush.msra.mxu0 %v691
        %715 = vmatpush.msra.mxu0 %v689
        %716 = vmatmul.f32.gmra.mxu0 %v695
        %v717 = vpop.f32.mrf.mxu0
        %v718 = vadd.f32 0.0, %v717
        %719 = vmatmul.f32.gmra.mxu0 %v698
        %v720 = vpop.f32.mrf.mxu0
        %v721 = vadd.f32 0.0, %v720
        %722 = vdwg.mxu0
        %723 = vrot.lane.b32.xlu0 %v396, 64
        %v724 = vpop.permute.xlu0 %723
        %725 = vrot.lane.b32.xlu0 %v399, 64
        %v726 = vpop.permute.xlu0 %725
        %v730 = vsel %vm572, %v614, 0
        %v733 = vsel %vm572, %v616, 0
        %735 = vmatpush.msra.mxu0 0.0
        %736 = vmatpush.msra.mxu0 0.0
        %737 = vmatpush.msra.mxu0 0.0
        %738 = vmatpush.msra.mxu0 0.0
        %739 = vmatpush.msra.mxu0 0.0
        %740 = vmatpush.msra.mxu0 0.0
        %741 = vmatpush.msra.mxu0 0.0
        %742 = vmatpush.msra.mxu0 0.0
        %743 = vmatpush.msra.mxu0 0.0
        %744 = vmatpush.msra.mxu0 0.0
        %745 = vmatpush.msra.mxu0 0.0
        %746 = vmatpush.msra.mxu0 0.0
        %747 = vmatpush.msra.mxu0 0.0
        %748 = vmatpush.msra.mxu0 0.0
        %749 = vmatpush.msra.mxu0 %v726
        %750 = vmatpush.msra.mxu0 %v724
        %751 = vmatmul.f32.gmra.mxu0 %v730
        %v752 = vpop.f32.mrf.mxu0
        %v753 = vadd.f32 0.0, %v752
        %754 = vmatmul.f32.gmra.mxu0 %v733
        %v755 = vpop.f32.mrf.mxu0
        %v756 = vadd.f32 0.0, %v755
        %757 = vdwg.mxu0
        %758 = vrot.lane.b32.xlu0 %v402, 64
        %v759 = vpop.permute.xlu0 %758
        %760 = vrot.lane.b32.xlu0 %v405, 64
        %v761 = vpop.permute.xlu0 %760
        %v765 = vsel %vm572, %v618, 0
        %v768 = vsel %vm572, %v620, 0
        %770 = vmatpush.msra.mxu0 0.0
        %771 = vmatpush.msra.mxu0 0.0
        %772 = vmatpush.msra.mxu0 0.0
        %773 = vmatpush.msra.mxu0 0.0
        %774 = vmatpush.msra.mxu0 0.0
        %775 = vmatpush.msra.mxu0 0.0
        %776 = vmatpush.msra.mxu0 0.0
        %777 = vmatpush.msra.mxu0 0.0
        %778 = vmatpush.msra.mxu0 0.0
        %779 = vmatpush.msra.mxu0 0.0
        %780 = vmatpush.msra.mxu0 0.0
        %781 = vmatpush.msra.mxu0 0.0
        %782 = vmatpush.msra.mxu0 0.0
        %783 = vmatpush.msra.mxu0 0.0
        %784 = vmatpush.msra.mxu0 %v761
        %785 = vmatpush.msra.mxu0 %v759
        %786 = vmatmul.f32.gmra.mxu0 %v765
        %v787 = vpop.f32.mrf.mxu0
        %v788 = vadd.f32 0.0, %v787
        %789 = vmatmul.f32.gmra.mxu0 %v768
        %v790 = vpop.f32.mrf.mxu0
        %v791 = vadd.f32 0.0, %v790
        %792 = vdwg.mxu0
        %v793 = vmul.f32 %v683, %v645
        %v794 = vmul.f32 %v686, %v646
        %v795 = vmul.f32 %v718, %v647
        %v796 = vmul.f32 %v721, %v648
        %v797 = vmul.f32 %v753, %v649
        %v798 = vmul.f32 %v756, %v650
        %v799 = vmul.f32 %v788, %v651
        %v800 = vmul.f32 %v791, %v652
        %801 = vrot.lane.b32.xlu0 %v384, 120
        %v802 = vpop.permute.xlu0 %801
        %803 = vrot.lane.b32.xlu0 %v387, 120
        %v804 = vpop.permute.xlu0 %803
        %805 = vrot.lane.b32.xlu0 %v384, 88
        %v806 = vpop.permute.xlu0 %805
        %807 = vrot.lane.b32.xlu0 %v387, 88
        %v808 = vpop.permute.xlu0 %807
        %v809 = vsel %vm421, %v802, 0
        %v811 = vsel %vm421, %v804, 0
        %v813 = vsel %vm421, %v806, 0
        %v815 = vsel %vm421, %v808, 0
        %817 = vmatpush.xpose.msra.mxu0 0.0
        %818 = vmatpush.xpose.msra.mxu0 0.0
        %819 = vmatpush.xpose.msra.mxu0 0.0
        %820 = vmatpush.xpose.msra.mxu0 0.0
        %821 = vmatpush.xpose.msra.mxu0 0.0
        %822 = vmatpush.xpose.msra.mxu0 0.0
        %823 = vmatpush.xpose.msra.mxu0 0.0
        %824 = vmatpush.xpose.msra.mxu0 0.0
        %825 = vmatpush.xpose.msra.mxu0 0.0
        %826 = vmatpush.xpose.msra.mxu0 0.0
        %827 = vmatpush.xpose.msra.mxu0 0.0
        %828 = vmatpush.xpose.msra.mxu0 0.0
        %829 = vmatpush.xpose.msra.mxu0 0.0
        %830 = vmatpush.xpose.msra.mxu0 0.0
        %831 = vmatpush.xpose.msra.mxu0 %v815
        %832 = vmatpush.xpose.msra.mxu0 %v813
        %833 = vmatmul.f32.gmra.mxu0 %v809
        %v834 = vpop.f32.mrf.mxu0
        %v835 = vadd.f32 0.0, %v834
        %836 = vmatmul.f32.gmra.mxu0 %v811
        %v837 = vpop.f32.mrf.mxu0
        %v838 = vadd.f32 0.0, %v837
        %839 = vdwg.mxu0
        %840 = vrot.lane.b32.xlu0 %v390, 120
        %v841 = vpop.permute.xlu0 %840
        %842 = vrot.lane.b32.xlu0 %v393, 120
        %v843 = vpop.permute.xlu0 %842
        %844 = vrot.lane.b32.xlu0 %v390, 88
        %v845 = vpop.permute.xlu0 %844
        %846 = vrot.lane.b32.xlu0 %v393, 88
        %v847 = vpop.permute.xlu0 %846
        %v848 = vsel %vm421, %v841, 0
        %v850 = vsel %vm421, %v843, 0
        %v852 = vsel %vm421, %v845, 0
        %v854 = vsel %vm421, %v847, 0
        %856 = vmatpush.xpose.msra.mxu0 0.0
        %857 = vmatpush.xpose.msra.mxu0 0.0
        %858 = vmatpush.xpose.msra.mxu0 0.0
        %859 = vmatpush.xpose.msra.mxu0 0.0
        %860 = vmatpush.xpose.msra.mxu0 0.0
        %861 = vmatpush.xpose.msra.mxu0 0.0
        %862 = vmatpush.xpose.msra.mxu0 0.0
        %863 = vmatpush.xpose.msra.mxu0 0.0
        %864 = vmatpush.xpose.msra.mxu0 0.0
        %865 = vmatpush.xpose.msra.mxu0 0.0
        %866 = vmatpush.xpose.msra.mxu0 0.0
        %867 = vmatpush.xpose.msra.mxu0 0.0
        %868 = vmatpush.xpose.msra.mxu0 0.0
        %869 = vmatpush.xpose.msra.mxu0 0.0
        %870 = vmatpush.xpose.msra.mxu0 %v854
        %871 = vmatpush.xpose.msra.mxu0 %v852
        %872 = vmatmul.f32.gmra.mxu0 %v848
        %v873 = vpop.f32.mrf.mxu0
        %v874 = vadd.f32 0.0, %v873
        %875 = vmatmul.f32.gmra.mxu0 %v850
        %v876 = vpop.f32.mrf.mxu0
        %v877 = vadd.f32 0.0, %v876
        %878 = vdwg.mxu0
        %879 = vrot.lane.b32.xlu0 %v396, 120
        %v880 = vpop.permute.xlu0 %879
        %881 = vrot.lane.b32.xlu0 %v399, 120
        %v882 = vpop.permute.xlu0 %881
        %883 = vrot.lane.b32.xlu0 %v396, 88
        %v884 = vpop.permute.xlu0 %883
        %885 = vrot.lane.b32.xlu0 %v399, 88
        %v886 = vpop.permute.xlu0 %885
        %v887 = vsel %vm421, %v880, 0
        %v889 = vsel %vm421, %v882, 0
        %v891 = vsel %vm421, %v884, 0
        %v893 = vsel %vm421, %v886, 0
        %895 = vmatpush.xpose.msra.mxu0 0.0
        %896 = vmatpush.xpose.msra.mxu0 0.0
        %897 = vmatpush.xpose.msra.mxu0 0.0
        %898 = vmatpush.xpose.msra.mxu0 0.0
        %899 = vmatpush.xpose.msra.mxu0 0.0
        %900 = vmatpush.xpose.msra.mxu0 0.0
        %901 = vmatpush.xpose.msra.mxu0 0.0
        %902 = vmatpush.xpose.msra.mxu0 0.0
        %903 = vmatpush.xpose.msra.mxu0 0.0
        %904 = vmatpush.xpose.msra.mxu0 0.0
        %905 = vmatpush.xpose.msra.mxu0 0.0
        %906 = vmatpush.xpose.msra.mxu0 0.0
        %907 = vmatpush.xpose.msra.mxu0 0.0
        %908 = vmatpush.xpose.msra.mxu0 0.0
        %909 = vmatpush.xpose.msra.mxu0 %v893
        %910 = vmatpush.xpose.msra.mxu0 %v891
        %911 = vmatmul.f32.gmra.mxu0 %v887
        %v912 = vpop.f32.mrf.mxu0
        %v913 = vadd.f32 0.0, %v912
        %914 = vmatmul.f32.gmra.mxu0 %v889
        %v915 = vpop.f32.mrf.mxu0
        %v916 = vadd.f32 0.0, %v915
        %917 = vdwg.mxu0
        %918 = vrot.lane.b32.xlu0 %v402, 120
        %v919 = vpop.permute.xlu0 %918
        %920 = vrot.lane.b32.xlu0 %v405, 120
        %v921 = vpop.permute.xlu0 %920
        %922 = vrot.lane.b32.xlu0 %v402, 88
        %v923 = vpop.permute.xlu0 %922
        %924 = vrot.lane.b32.xlu0 %v405, 88
        %v925 = vpop.permute.xlu0 %924
        %v926 = vsel %vm421, %v919, 0
        %v928 = vsel %vm421, %v921, 0
        %v930 = vsel %vm421, %v923, 0
        %v932 = vsel %vm421, %v925, 0
        %934 = vmatpush.xpose.msra.mxu0 0.0
        %935 = vmatpush.xpose.msra.mxu0 0.0
        %936 = vmatpush.xpose.msra.mxu0 0.0
        %937 = vmatpush.xpose.msra.mxu0 0.0
        %938 = vmatpush.xpose.msra.mxu0 0.0
        %939 = vmatpush.xpose.msra.mxu0 0.0
        %940 = vmatpush.xpose.msra.mxu0 0.0
        %941 = vmatpush.xpose.msra.mxu0 0.0
        %942 = vmatpush.xpose.msra.mxu0 0.0
        %943 = vmatpush.xpose.msra.mxu0 0.0
        %944 = vmatpush.xpose.msra.mxu0 0.0
        %945 = vmatpush.xpose.msra.mxu0 0.0
        %946 = vmatpush.xpose.msra.mxu0 0.0
        %947 = vmatpush.xpose.msra.mxu0 0.0
        %948 = vmatpush.xpose.msra.mxu0 %v932
        %949 = vmatpush.xpose.msra.mxu0 %v930
        %950 = vmatmul.f32.gmra.mxu0 %v926
        %v951 = vpop.f32.mrf.mxu0
        %v952 = vadd.f32 0.0, %v951
        %953 = vmatmul.f32.gmra.mxu0 %v928
        %v954 = vpop.f32.mrf.mxu0
        %v955 = vadd.f32 0.0, %v954
        %956 = vdwg.mxu0
        %v957 = vadd.f32 %v835, %v409
        %v958 = vadd.f32 %v838, %v410
        %v959 = vadd.f32 %v874, %v409
        %v960 = vadd.f32 %v877, %v410
        %v961 = vadd.f32 %v913, %v409
        %v962 = vadd.f32 %v916, %v410
        %v963 = vadd.f32 %v952, %v409
        %v964 = vadd.f32 %v955, %v410
        %v965 = vsel %vm572, %v957, -inf
        %966 = vmax.xlane.f32.xlu0 %v965
        %v967 = vpop.xlane.xlu0 %966
        %v968 = vsel %vm572, %v958, -inf
        %969 = vmax.xlane.f32.xlu0 %v968
        %v970 = vpop.xlane.xlu0 %969
        %v971 = vsel %vm572, %v959, -inf
        %972 = vmax.xlane.f32.xlu0 %v971
        %v973 = vpop.xlane.xlu0 %972
        %v974 = vsel %vm572, %v960, -inf
        %975 = vmax.xlane.f32.xlu0 %v974
        %v976 = vpop.xlane.xlu0 %975
        %v977 = vsel %vm572, %v961, -inf
        %978 = vmax.xlane.f32.xlu0 %v977
        %v979 = vpop.xlane.xlu0 %978
        %v980 = vsel %vm572, %v962, -inf
        %981 = vmax.xlane.f32.xlu0 %v980
        %v982 = vpop.xlane.xlu0 %981
        %v983 = vsel %vm572, %v963, -inf
        %984 = vmax.xlane.f32.xlu0 %v983
        %v985 = vpop.xlane.xlu0 %984
        %v986 = vsel %vm572, %v964, -inf
        %987 = vmax.xlane.f32.xlu0 %v986
        %v988 = vpop.xlane.xlu0 %987
        %v989 = vsub.f32 %v957, %v967
        %v990 = vsub.f32 %v958, %v970
        %v991 = vsub.f32 %v959, %v973
        %v992 = vsub.f32 %v960, %v976
        %v993 = vsub.f32 %v961, %v979
        %v994 = vsub.f32 %v962, %v982
        %v995 = vsub.f32 %v963, %v985
        %v996 = vsub.f32 %v964, %v988
        %v997 = vmul.f32 %v989, 1.442695
        %v998 = vpow.pop %v997
        %v999 = vmul.f32 %v990, 1.442695
        %v1000 = vpow.pop %v999
        %v1001 = vmul.f32 %v991, 1.442695
        %v1002 = vpow.pop %v1001
        %v1003 = vmul.f32 %v992, 1.442695
        %v1004 = vpow.pop %v1003
        %v1005 = vmul.f32 %v993, 1.442695
        %v1006 = vpow.pop %v1005
        %v1007 = vmul.f32 %v994, 1.442695
        %v1008 = vpow.pop %v1007
        %v1009 = vmul.f32 %v995, 1.442695
        %v1010 = vpow.pop %v1009
        %v1011 = vmul.f32 %v996, 1.442695
        %v1012 = vpow.pop %v1011
        %v1013 = vsel %vm572, %v998, 0.0
        %1014 = vadd.xlane.f32.xlu0 %v1013
        %v1015 = vpop.xlane.xlu0 %1014
        %v1016 = vsel %vm572, %v1000, 0.0
        %1017 = vadd.xlane.f32.xlu0 %v1016
        %v1018 = vpop.xlane.xlu0 %1017
        %v1019 = vsel %vm572, %v1002, 0.0
        %1020 = vadd.xlane.f32.xlu0 %v1019
        %v1021 = vpop.xlane.xlu0 %1020
        %v1022 = vsel %vm572, %v1004, 0.0
        %1023 = vadd.xlane.f32.xlu0 %v1022
        %v1024 = vpop.xlane.xlu0 %1023
        %v1025 = vsel %vm572, %v1006, 0.0
        %1026 = vadd.xlane.f32.xlu0 %v1025
        %v1027 = vpop.xlane.xlu0 %1026
        %v1028 = vsel %vm572, %v1008, 0.0
        %1029 = vadd.xlane.f32.xlu0 %v1028
        %v1030 = vpop.xlane.xlu0 %1029
        %v1031 = vsel %vm572, %v1010, 0.0
        %1032 = vadd.xlane.f32.xlu0 %v1031
        %v1033 = vpop.xlane.xlu0 %1032
        %v1034 = vsel %vm572, %v1012, 0.0
        %1035 = vadd.xlane.f32.xlu0 %v1034
        %v1036 = vpop.xlane.xlu0 %1035
        %v1037 = vrcp.pop %v1015
        %v1038 = vrcp.pop %v1018
        %v1039 = vrcp.pop %v1021
        %v1040 = vrcp.pop %v1024
        %v1041 = vrcp.pop %v1027
        %v1042 = vrcp.pop %v1030
        %v1043 = vrcp.pop %v1033
        %v1044 = vrcp.pop %v1036
        %1045 = vrot.lane.b32.xlu0 %v384, 56
        %v1046 = vpop.permute.xlu0 %1045
        %1047 = vrot.lane.b32.xlu0 %v387, 56
        %v1048 = vpop.permute.xlu0 %1047
        %v1052 = vsel %vm572, %v998, 0
        %v1055 = vsel %vm572, %v1000, 0
        %1057 = vmatpush.msra.mxu0 0.0
        %1058 = vmatpush.msra.mxu0 0.0
        %1059 = vmatpush.msra.mxu0 0.0
        %1060 = vmatpush.msra.mxu0 0.0
        %1061 = vmatpush.msra.mxu0 0.0
        %1062 = vmatpush.msra.mxu0 0.0
        %1063 = vmatpush.msra.mxu0 0.0
        %1064 = vmatpush.msra.mxu0 0.0
        %1065 = vmatpush.msra.mxu0 0.0
        %1066 = vmatpush.msra.mxu0 0.0
        %1067 = vmatpush.msra.mxu0 0.0
        %1068 = vmatpush.msra.mxu0 0.0
        %1069 = vmatpush.msra.mxu0 0.0
        %1070 = vmatpush.msra.mxu0 0.0
        %1071 = vmatpush.msra.mxu0 %v1048
        %1072 = vmatpush.msra.mxu0 %v1046
        %1073 = vmatmul.f32.gmra.mxu0 %v1052
        %v1074 = vpop.f32.mrf.mxu0
        %v1075 = vadd.f32 0.0, %v1074
        %1076 = vmatmul.f32.gmra.mxu0 %v1055
        %v1077 = vpop.f32.mrf.mxu0
        %v1078 = vadd.f32 0.0, %v1077
        %1079 = vdwg.mxu0
        %1080 = vrot.lane.b32.xlu0 %v390, 56
        %v1081 = vpop.permute.xlu0 %1080
        %1082 = vrot.lane.b32.xlu0 %v393, 56
        %v1083 = vpop.permute.xlu0 %1082
        %v1087 = vsel %vm572, %v1002, 0
        %v1090 = vsel %vm572, %v1004, 0
        %1092 = vmatpush.msra.mxu0 0.0
        %1093 = vmatpush.msra.mxu0 0.0
        %1094 = vmatpush.msra.mxu0 0.0
        %1095 = vmatpush.msra.mxu0 0.0
        %1096 = vmatpush.msra.mxu0 0.0
        %1097 = vmatpush.msra.mxu0 0.0
        %1098 = vmatpush.msra.mxu0 0.0
        %1099 = vmatpush.msra.mxu0 0.0
        %1100 = vmatpush.msra.mxu0 0.0
        %1101 = vmatpush.msra.mxu0 0.0
        %1102 = vmatpush.msra.mxu0 0.0
        %1103 = vmatpush.msra.mxu0 0.0
        %1104 = vmatpush.msra.mxu0 0.0
        %1105 = vmatpush.msra.mxu0 0.0
        %1106 = vmatpush.msra.mxu0 %v1083
        %1107 = vmatpush.msra.mxu0 %v1081
        %1108 = vmatmul.f32.gmra.mxu0 %v1087
        %v1109 = vpop.f32.mrf.mxu0
        %v1110 = vadd.f32 0.0, %v1109
        %1111 = vmatmul.f32.gmra.mxu0 %v1090
        %v1112 = vpop.f32.mrf.mxu0
        %v1113 = vadd.f32 0.0, %v1112
        %1114 = vdwg.mxu0
        %1115 = vrot.lane.b32.xlu0 %v396, 56
        %v1116 = vpop.permute.xlu0 %1115
        %1117 = vrot.lane.b32.xlu0 %v399, 56
        %v1118 = vpop.permute.xlu0 %1117
        %v1122 = vsel %vm572, %v1006, 0
        %v1125 = vsel %vm572, %v1008, 0
        %1127 = vmatpush.msra.mxu0 0.0
        %1128 = vmatpush.msra.mxu0 0.0
        %1129 = vmatpush.msra.mxu0 0.0
        %1130 = vmatpush.msra.mxu0 0.0
        %1131 = vmatpush.msra.mxu0 0.0
        %1132 = vmatpush.msra.mxu0 0.0
        %1133 = vmatpush.msra.mxu0 0.0
        %1134 = vmatpush.msra.mxu0 0.0
        %1135 = vmatpush.msra.mxu0 0.0
        %1136 = vmatpush.msra.mxu0 0.0
        %1137 = vmatpush.msra.mxu0 0.0
        %1138 = vmatpush.msra.mxu0 0.0
        %1139 = vmatpush.msra.mxu0 0.0
        %1140 = vmatpush.msra.mxu0 0.0
        %1141 = vmatpush.msra.mxu0 %v1118
        %1142 = vmatpush.msra.mxu0 %v1116
        %1143 = vmatmul.f32.gmra.mxu0 %v1122
        %v1144 = vpop.f32.mrf.mxu0
        %v1145 = vadd.f32 0.0, %v1144
        %1146 = vmatmul.f32.gmra.mxu0 %v1125
        %v1147 = vpop.f32.mrf.mxu0
        %v1148 = vadd.f32 0.0, %v1147
        %1149 = vdwg.mxu0
        %1150 = vrot.lane.b32.xlu0 %v402, 56
        %v1151 = vpop.permute.xlu0 %1150
        %1152 = vrot.lane.b32.xlu0 %v405, 56
        %v1153 = vpop.permute.xlu0 %1152
        %v1157 = vsel %vm572, %v1010, 0
        %v1160 = vsel %vm572, %v1012, 0
        %1162 = vmatpush.msra.mxu0 0.0
        %1163 = vmatpush.msra.mxu0 0.0
        %1164 = vmatpush.msra.mxu0 0.0
        %1165 = vmatpush.msra.mxu0 0.0
        %1166 = vmatpush.msra.mxu0 0.0
        %1167 = vmatpush.msra.mxu0 0.0
        %1168 = vmatpush.msra.mxu0 0.0
        %1169 = vmatpush.msra.mxu0 0.0
        %1170 = vmatpush.msra.mxu0 0.0
        %1171 = vmatpush.msra.mxu0 0.0
        %1172 = vmatpush.msra.mxu0 0.0
        %1173 = vmatpush.msra.mxu0 0.0
        %1174 = vmatpush.msra.mxu0 0.0
        %1175 = vmatpush.msra.mxu0 0.0
        %1176 = vmatpush.msra.mxu0 %v1153
        %1177 = vmatpush.msra.mxu0 %v1151
        %1178 = vmatmul.f32.gmra.mxu0 %v1157
        %v1179 = vpop.f32.mrf.mxu0
        %v1180 = vadd.f32 0.0, %v1179
        %1181 = vmatmul.f32.gmra.mxu0 %v1160
        %v1182 = vpop.f32.mrf.mxu0
        %v1183 = vadd.f32 0.0, %v1182
        %1184 = vdwg.mxu0
        %v1185 = vmul.f32 %v1075, %v1037
        %v1186 = vmul.f32 %v1078, %v1038
        %v1187 = vmul.f32 %v1110, %v1039
        %v1188 = vmul.f32 %v1113, %v1040
        %v1189 = vmul.f32 %v1145, %v1041
        %v1190 = vmul.f32 %v1148, %v1042
        %v1191 = vmul.f32 %v1180, %v1043
        %v1192 = vmul.f32 %v1183, %v1044
        %1193 = vrot.lane.b32.xlu0 %v384, 112
        %v1194 = vpop.permute.xlu0 %1193
        %1195 = vrot.lane.b32.xlu0 %v387, 112
        %v1196 = vpop.permute.xlu0 %1195
        %1197 = vrot.lane.b32.xlu0 %v384, 80
        %v1198 = vpop.permute.xlu0 %1197
        %1199 = vrot.lane.b32.xlu0 %v387, 80
        %v1200 = vpop.permute.xlu0 %1199
        %v1201 = vsel %vm421, %v1194, 0
        %v1203 = vsel %vm421, %v1196, 0
        %v1205 = vsel %vm421, %v1198, 0
        %v1207 = vsel %vm421, %v1200, 0
        %1209 = vmatpush.xpose.msra.mxu0 0.0
        %1210 = vmatpush.xpose.msra.mxu0 0.0
        %1211 = vmatpush.xpose.msra.mxu0 0.0
        %1212 = vmatpush.xpose.msra.mxu0 0.0
        %1213 = vmatpush.xpose.msra.mxu0 0.0
        %1214 = vmatpush.xpose.msra.mxu0 0.0
        %1215 = vmatpush.xpose.msra.mxu0 0.0
        %1216 = vmatpush.xpose.msra.mxu0 0.0
        %1217 = vmatpush.xpose.msra.mxu0 0.0
        %1218 = vmatpush.xpose.msra.mxu0 0.0
        %1219 = vmatpush.xpose.msra.mxu0 0.0
        %1220 = vmatpush.xpose.msra.mxu0 0.0
        %1221 = vmatpush.xpose.msra.mxu0 0.0
        %1222 = vmatpush.xpose.msra.mxu0 0.0
        %1223 = vmatpush.xpose.msra.mxu0 %v1207
        %1224 = vmatpush.xpose.msra.mxu0 %v1205
        %1225 = vmatmul.f32.gmra.mxu0 %v1201
        %v1226 = vpop.f32.mrf.mxu0
        %v1227 = vadd.f32 0.0, %v1226
        %1228 = vmatmul.f32.gmra.mxu0 %v1203
        %v1229 = vpop.f32.mrf.mxu0
        %v1230 = vadd.f32 0.0, %v1229
        %1231 = vdwg.mxu0
        %1232 = vrot.lane.b32.xlu0 %v390, 112
        %v1233 = vpop.permute.xlu0 %1232
        %1234 = vrot.lane.b32.xlu0 %v393, 112
        %v1235 = vpop.permute.xlu0 %1234
        %1236 = vrot.lane.b32.xlu0 %v390, 80
        %v1237 = vpop.permute.xlu0 %1236
        %1238 = vrot.lane.b32.xlu0 %v393, 80
        %v1239 = vpop.permute.xlu0 %1238
        %v1240 = vsel %vm421, %v1233, 0
        %v1242 = vsel %vm421, %v1235, 0
        %v1244 = vsel %vm421, %v1237, 0
        %v1246 = vsel %vm421, %v1239, 0
        %1248 = vmatpush.xpose.msra.mxu0 0.0
        %1249 = vmatpush.xpose.msra.mxu0 0.0
        %1250 = vmatpush.xpose.msra.mxu0 0.0
        %1251 = vmatpush.xpose.msra.mxu0 0.0
        %1252 = vmatpush.xpose.msra.mxu0 0.0
        %1253 = vmatpush.xpose.msra.mxu0 0.0
        %1254 = vmatpush.xpose.msra.mxu0 0.0
        %1255 = vmatpush.xpose.msra.mxu0 0.0
        %1256 = vmatpush.xpose.msra.mxu0 0.0
        %1257 = vmatpush.xpose.msra.mxu0 0.0
        %1258 = vmatpush.xpose.msra.mxu0 0.0
        %1259 = vmatpush.xpose.msra.mxu0 0.0
        %1260 = vmatpush.xpose.msra.mxu0 0.0
        %1261 = vmatpush.xpose.msra.mxu0 0.0
        %1262 = vmatpush.xpose.msra.mxu0 %v1246
        %1263 = vmatpush.xpose.msra.mxu0 %v1244
        %1264 = vmatmul.f32.gmra.mxu0 %v1240
        %v1265 = vpop.f32.mrf.mxu0
        %v1266 = vadd.f32 0.0, %v1265
        %1267 = vmatmul.f32.gmra.mxu0 %v1242
        %v1268 = vpop.f32.mrf.mxu0
        %v1269 = vadd.f32 0.0, %v1268
        %1270 = vdwg.mxu0
        %1271 = vrot.lane.b32.xlu0 %v396, 112
        %v1272 = vpop.permute.xlu0 %1271
        %1273 = vrot.lane.b32.xlu0 %v399, 112
        %v1274 = vpop.permute.xlu0 %1273
        %1275 = vrot.lane.b32.xlu0 %v396, 80
        %v1276 = vpop.permute.xlu0 %1275
        %1277 = vrot.lane.b32.xlu0 %v399, 80
        %v1278 = vpop.permute.xlu0 %1277
        %v1279 = vsel %vm421, %v1272, 0
        %v1281 = vsel %vm421, %v1274, 0
        %v1283 = vsel %vm421, %v1276, 0
        %v1285 = vsel %vm421, %v1278, 0
        %1287 = vmatpush.xpose.msra.mxu0 0.0
        %1288 = vmatpush.xpose.msra.mxu0 0.0
        %1289 = vmatpush.xpose.msra.mxu0 0.0
        %1290 = vmatpush.xpose.msra.mxu0 0.0
        %1291 = vmatpush.xpose.msra.mxu0 0.0
        %1292 = vmatpush.xpose.msra.mxu0 0.0
        %1293 = vmatpush.xpose.msra.mxu0 0.0
        %1294 = vmatpush.xpose.msra.mxu0 0.0
        %1295 = vmatpush.xpose.msra.mxu0 0.0
        %1296 = vmatpush.xpose.msra.mxu0 0.0
        %1297 = vmatpush.xpose.msra.mxu0 0.0
        %1298 = vmatpush.xpose.msra.mxu0 0.0
        %1299 = vmatpush.xpose.msra.mxu0 0.0
        %1300 = vmatpush.xpose.msra.mxu0 0.0
        %1301 = vmatpush.xpose.msra.mxu0 %v1285
        %1302 = vmatpush.xpose.msra.mxu0 %v1283
        %1303 = vmatmul.f32.gmra.mxu0 %v1279
        %v1304 = vpop.f32.mrf.mxu0
        %v1305 = vadd.f32 0.0, %v1304
        %1306 = vmatmul.f32.gmra.mxu0 %v1281
        %v1307 = vpop.f32.mrf.mxu0
        %v1308 = vadd.f32 0.0, %v1307
        %1309 = vdwg.mxu0
        %1310 = vrot.lane.b32.xlu0 %v402, 112
        %v1311 = vpop.permute.xlu0 %1310
        %1312 = vrot.lane.b32.xlu0 %v405, 112
        %v1313 = vpop.permute.xlu0 %1312
        %1314 = vrot.lane.b32.xlu0 %v402, 80
        %v1315 = vpop.permute.xlu0 %1314
        %1316 = vrot.lane.b32.xlu0 %v405, 80
        %v1317 = vpop.permute.xlu0 %1316
        %v1318 = vsel %vm421, %v1311, 0
        %v1320 = vsel %vm421, %v1313, 0
        %v1322 = vsel %vm421, %v1315, 0
        %v1324 = vsel %vm421, %v1317, 0
        %1326 = vmatpush.xpose.msra.mxu0 0.0
        %1327 = vmatpush.xpose.msra.mxu0 0.0
        %1328 = vmatpush.xpose.msra.mxu0 0.0
        %1329 = vmatpush.xpose.msra.mxu0 0.0
        %1330 = vmatpush.xpose.msra.mxu0 0.0
        %1331 = vmatpush.xpose.msra.mxu0 0.0
        %1332 = vmatpush.xpose.msra.mxu0 0.0
        %1333 = vmatpush.xpose.msra.mxu0 0.0
        %1334 = vmatpush.xpose.msra.mxu0 0.0
        %1335 = vmatpush.xpose.msra.mxu0 0.0
        %1336 = vmatpush.xpose.msra.mxu0 0.0
        %1337 = vmatpush.xpose.msra.mxu0 0.0
        %1338 = vmatpush.xpose.msra.mxu0 0.0
        %1339 = vmatpush.xpose.msra.mxu0 0.0
        %1340 = vmatpush.xpose.msra.mxu0 %v1324
        %1341 = vmatpush.xpose.msra.mxu0 %v1322
        %1342 = vmatmul.f32.gmra.mxu0 %v1318
        %v1343 = vpop.f32.mrf.mxu0
        %v1344 = vadd.f32 0.0, %v1343
        %1345 = vmatmul.f32.gmra.mxu0 %v1320
        %v1346 = vpop.f32.mrf.mxu0
        %v1347 = vadd.f32 0.0, %v1346
        %1348 = vdwg.mxu0
        %v1349 = vadd.f32 %v1227, %v411
        %v1350 = vadd.f32 %v1230, %v412
        %v1351 = vadd.f32 %v1266, %v411
        %v1352 = vadd.f32 %v1269, %v412
        %v1353 = vadd.f32 %v1305, %v411
        %v1354 = vadd.f32 %v1308, %v412
        %v1355 = vadd.f32 %v1344, %v411
        %v1356 = vadd.f32 %v1347, %v412
        %v1357 = vsel %vm572, %v1349, -inf
        %1358 = vmax.xlane.f32.xlu0 %v1357
        %v1359 = vpop.xlane.xlu0 %1358
        %v1360 = vsel %vm572, %v1350, -inf
        %1361 = vmax.xlane.f32.xlu0 %v1360
        %v1362 = vpop.xlane.xlu0 %1361
        %v1363 = vsel %vm572, %v1351, -inf
        %1364 = vmax.xlane.f32.xlu0 %v1363
        %v1365 = vpop.xlane.xlu0 %1364
        %v1366 = vsel %vm572, %v1352, -inf
        %1367 = vmax.xlane.f32.xlu0 %v1366
        %v1368 = vpop.xlane.xlu0 %1367
        %v1369 = vsel %vm572, %v1353, -inf
        %1370 = vmax.xlane.f32.xlu0 %v1369
        %v1371 = vpop.xlane.xlu0 %1370
        %v1372 = vsel %vm572, %v1354, -inf
        %1373 = vmax.xlane.f32.xlu0 %v1372
        %v1374 = vpop.xlane.xlu0 %1373
        %v1375 = vsel %vm572, %v1355, -inf
        %1376 = vmax.xlane.f32.xlu0 %v1375
        %v1377 = vpop.xlane.xlu0 %1376
        %v1378 = vsel %vm572, %v1356, -inf
        %1379 = vmax.xlane.f32.xlu0 %v1378
        %v1380 = vpop.xlane.xlu0 %1379
        %v1381 = vsub.f32 %v1349, %v1359
        %v1382 = vsub.f32 %v1350, %v1362
        %v1383 = vsub.f32 %v1351, %v1365
        %v1384 = vsub.f32 %v1352, %v1368
        %v1385 = vsub.f32 %v1353, %v1371
        %v1386 = vsub.f32 %v1354, %v1374
        %v1387 = vsub.f32 %v1355, %v1377
        %v1388 = vsub.f32 %v1356, %v1380
        %v1389 = vmul.f32 %v1381, 1.442695
        %v1390 = vpow.pop %v1389
        %v1391 = vmul.f32 %v1382, 1.442695
        %v1392 = vpow.pop %v1391
        %v1393 = vmul.f32 %v1383, 1.442695
        %v1394 = vpow.pop %v1393
        %v1395 = vmul.f32 %v1384, 1.442695
        %v1396 = vpow.pop %v1395
        %v1397 = vmul.f32 %v1385, 1.442695
        %v1398 = vpow.pop %v1397
        %v1399 = vmul.f32 %v1386, 1.442695
        %v1400 = vpow.pop %v1399
        %v1401 = vmul.f32 %v1387, 1.442695
        %v1402 = vpow.pop %v1401
        %v1403 = vmul.f32 %v1388, 1.442695
        %v1404 = vpow.pop %v1403
        %v1405 = vsel %vm572, %v1390, 0.0
        %1406 = vadd.xlane.f32.xlu0 %v1405
        %v1407 = vpop.xlane.xlu0 %1406
        %v1408 = vsel %vm572, %v1392, 0.0
        %1409 = vadd.xlane.f32.xlu0 %v1408
        %v1410 = vpop.xlane.xlu0 %1409
        %v1411 = vsel %vm572, %v1394, 0.0
        %1412 = vadd.xlane.f32.xlu0 %v1411
        %v1413 = vpop.xlane.xlu0 %1412
        %v1414 = vsel %vm572, %v1396, 0.0
        %1415 = vadd.xlane.f32.xlu0 %v1414
        %v1416 = vpop.xlane.xlu0 %1415
        %v1417 = vsel %vm572, %v1398, 0.0
        %1418 = vadd.xlane.f32.xlu0 %v1417
        %v1419 = vpop.xlane.xlu0 %1418
        %v1420 = vsel %vm572, %v1400, 0.0
        %1421 = vadd.xlane.f32.xlu0 %v1420
        %v1422 = vpop.xlane.xlu0 %1421
        %v1423 = vsel %vm572, %v1402, 0.0
        %1424 = vadd.xlane.f32.xlu0 %v1423
        %v1425 = vpop.xlane.xlu0 %1424
        %v1426 = vsel %vm572, %v1404, 0.0
        %1427 = vadd.xlane.f32.xlu0 %v1426
        %v1428 = vpop.xlane.xlu0 %1427
        %v1429 = vrcp.pop %v1407
        %v1430 = vrcp.pop %v1410
        %v1431 = vrcp.pop %v1413
        %v1432 = vrcp.pop %v1416
        %v1433 = vrcp.pop %v1419
        %v1434 = vrcp.pop %v1422
        %v1435 = vrcp.pop %v1425
        %v1436 = vrcp.pop %v1428
        %1437 = vrot.lane.b32.xlu0 %v384, 48
        %v1438 = vpop.permute.xlu0 %1437
        %1439 = vrot.lane.b32.xlu0 %v387, 48
        %v1440 = vpop.permute.xlu0 %1439
        %v1444 = vsel %vm572, %v1390, 0
        %v1447 = vsel %vm572, %v1392, 0
        %1449 = vmatpush.msra.mxu0 0.0
        %1450 = vmatpush.msra.mxu0 0.0
        %1451 = vmatpush.msra.mxu0 0.0
        %1452 = vmatpush.msra.mxu0 0.0
        %1453 = vmatpush.msra.mxu0 0.0
        %1454 = vmatpush.msra.mxu0 0.0
        %1455 = vmatpush.msra.mxu0 0.0
        %1456 = vmatpush.msra.mxu0 0.0
        %1457 = vmatpush.msra.mxu0 0.0
        %1458 = vmatpush.msra.mxu0 0.0
        %1459 = vmatpush.msra.mxu0 0.0
        %1460 = vmatpush.msra.mxu0 0.0
        %1461 = vmatpush.msra.mxu0 0.0
        %1462 = vmatpush.msra.mxu0 0.0
        %1463 = vmatpush.msra.mxu0 %v1440
        %1464 = vmatpush.msra.mxu0 %v1438
        %1465 = vmatmul.f32.gmra.mxu0 %v1444
        %v1466 = vpop.f32.mrf.mxu0
        %v1467 = vadd.f32 0.0, %v1466
        %1468 = vmatmul.f32.gmra.mxu0 %v1447
        %v1469 = vpop.f32.mrf.mxu0
        %v1470 = vadd.f32 0.0, %v1469
        %1471 = vdwg.mxu0
        %1472 = vrot.lane.b32.xlu0 %v390, 48
        %v1473 = vpop.permute.xlu0 %1472
        %1474 = vrot.lane.b32.xlu0 %v393, 48
        %v1475 = vpop.permute.xlu0 %1474
        %v1479 = vsel %vm572, %v1394, 0
        %v1482 = vsel %vm572, %v1396, 0
        %1484 = vmatpush.msra.mxu0 0.0
        %1485 = vmatpush.msra.mxu0 0.0
        %1486 = vmatpush.msra.mxu0 0.0
        %1487 = vmatpush.msra.mxu0 0.0
        %1488 = vmatpush.msra.mxu0 0.0
        %1489 = vmatpush.msra.mxu0 0.0
        %1490 = vmatpush.msra.mxu0 0.0
        %1491 = vmatpush.msra.mxu0 0.0
        %1492 = vmatpush.msra.mxu0 0.0
        %1493 = vmatpush.msra.mxu0 0.0
        %1494 = vmatpush.msra.mxu0 0.0
        %1495 = vmatpush.msra.mxu0 0.0
        %1496 = vmatpush.msra.mxu0 0.0
        %1497 = vmatpush.msra.mxu0 0.0
        %1498 = vmatpush.msra.mxu0 %v1475
        %1499 = vmatpush.msra.mxu0 %v1473
        %1500 = vmatmul.f32.gmra.mxu0 %v1479
        %v1501 = vpop.f32.mrf.mxu0
        %v1502 = vadd.f32 0.0, %v1501
        %1503 = vmatmul.f32.gmra.mxu0 %v1482
        %v1504 = vpop.f32.mrf.mxu0
        %v1505 = vadd.f32 0.0, %v1504
        %1506 = vdwg.mxu0
        %1507 = vrot.lane.b32.xlu0 %v396, 48
        %v1508 = vpop.permute.xlu0 %1507
        %1509 = vrot.lane.b32.xlu0 %v399, 48
        %v1510 = vpop.permute.xlu0 %1509
        %v1514 = vsel %vm572, %v1398, 0
        %v1517 = vsel %vm572, %v1400, 0
        %1519 = vmatpush.msra.mxu0 0.0
        %1520 = vmatpush.msra.mxu0 0.0
        %1521 = vmatpush.msra.mxu0 0.0
        %1522 = vmatpush.msra.mxu0 0.0
        %1523 = vmatpush.msra.mxu0 0.0
        %1524 = vmatpush.msra.mxu0 0.0
        %1525 = vmatpush.msra.mxu0 0.0
        %1526 = vmatpush.msra.mxu0 0.0
        %1527 = vmatpush.msra.mxu0 0.0
        %1528 = vmatpush.msra.mxu0 0.0
        %1529 = vmatpush.msra.mxu0 0.0
        %1530 = vmatpush.msra.mxu0 0.0
        %1531 = vmatpush.msra.mxu0 0.0
        %1532 = vmatpush.msra.mxu0 0.0
        %1533 = vmatpush.msra.mxu0 %v1510
        %1534 = vmatpush.msra.mxu0 %v1508
        %1535 = vmatmul.f32.gmra.mxu0 %v1514
        %v1536 = vpop.f32.mrf.mxu0
        %v1537 = vadd.f32 0.0, %v1536
        %1538 = vmatmul.f32.gmra.mxu0 %v1517
        %v1539 = vpop.f32.mrf.mxu0
        %v1540 = vadd.f32 0.0, %v1539
        %1541 = vdwg.mxu0
        %1542 = vrot.lane.b32.xlu0 %v402, 48
        %v1543 = vpop.permute.xlu0 %1542
        %1544 = vrot.lane.b32.xlu0 %v405, 48
        %v1545 = vpop.permute.xlu0 %1544
        %v1549 = vsel %vm572, %v1402, 0
        %v1552 = vsel %vm572, %v1404, 0
        %1554 = vmatpush.msra.mxu0 0.0
        %1555 = vmatpush.msra.mxu0 0.0
        %1556 = vmatpush.msra.mxu0 0.0
        %1557 = vmatpush.msra.mxu0 0.0
        %1558 = vmatpush.msra.mxu0 0.0
        %1559 = vmatpush.msra.mxu0 0.0
        %1560 = vmatpush.msra.mxu0 0.0
        %1561 = vmatpush.msra.mxu0 0.0
        %1562 = vmatpush.msra.mxu0 0.0
        %1563 = vmatpush.msra.mxu0 0.0
        %1564 = vmatpush.msra.mxu0 0.0
        %1565 = vmatpush.msra.mxu0 0.0
        %1566 = vmatpush.msra.mxu0 0.0
        %1567 = vmatpush.msra.mxu0 0.0
        %1568 = vmatpush.msra.mxu0 %v1545
        %1569 = vmatpush.msra.mxu0 %v1543
        %1570 = vmatmul.f32.gmra.mxu0 %v1549
        %v1571 = vpop.f32.mrf.mxu0
        %v1572 = vadd.f32 0.0, %v1571
        %1573 = vmatmul.f32.gmra.mxu0 %v1552
        %v1574 = vpop.f32.mrf.mxu0
        %v1575 = vadd.f32 0.0, %v1574
        %1576 = vdwg.mxu0
        %v1577 = vmul.f32 %v1467, %v1429
        %v1578 = vmul.f32 %v1470, %v1430
        %v1579 = vmul.f32 %v1502, %v1431
        %v1580 = vmul.f32 %v1505, %v1432
        %v1581 = vmul.f32 %v1537, %v1433
        %v1582 = vmul.f32 %v1540, %v1434
        %v1583 = vmul.f32 %v1572, %v1435
        %v1584 = vmul.f32 %v1575, %v1436
        %1585 = vrot.lane.b32.xlu0 %v384, 104
        %v1586 = vpop.permute.xlu0 %1585
        %1587 = vrot.lane.b32.xlu0 %v387, 104
        %v1588 = vpop.permute.xlu0 %1587
        %1589 = vrot.lane.b32.xlu0 %v384, 72
        %v1590 = vpop.permute.xlu0 %1589
        %1591 = vrot.lane.b32.xlu0 %v387, 72
        %v1592 = vpop.permute.xlu0 %1591
        %v1593 = vsel %vm421, %v1586, 0
        %v1595 = vsel %vm421, %v1588, 0
        %v1597 = vsel %vm421, %v1590, 0
        %v1599 = vsel %vm421, %v1592, 0
        %1601 = vmatpush.xpose.msra.mxu0 0.0
        %1602 = vmatpush.xpose.msra.mxu0 0.0
        %1603 = vmatpush.xpose.msra.mxu0 0.0
        %1604 = vmatpush.xpose.msra.mxu0 0.0
        %1605 = vmatpush.xpose.msra.mxu0 0.0
        %1606 = vmatpush.xpose.msra.mxu0 0.0
        %1607 = vmatpush.xpose.msra.mxu0 0.0
        %1608 = vmatpush.xpose.msra.mxu0 0.0
        %1609 = vmatpush.xpose.msra.mxu0 0.0
        %1610 = vmatpush.xpose.msra.mxu0 0.0
        %1611 = vmatpush.xpose.msra.mxu0 0.0
        %1612 = vmatpush.xpose.msra.mxu0 0.0
        %1613 = vmatpush.xpose.msra.mxu0 0.0
        %1614 = vmatpush.xpose.msra.mxu0 0.0
        %1615 = vmatpush.xpose.msra.mxu0 %v1599
        %1616 = vmatpush.xpose.msra.mxu0 %v1597
        %1617 = vmatmul.f32.gmra.mxu0 %v1593
        %v1618 = vpop.f32.mrf.mxu0
        %v1619 = vadd.f32 0.0, %v1618
        %1620 = vmatmul.f32.gmra.mxu0 %v1595
        %v1621 = vpop.f32.mrf.mxu0
        %v1622 = vadd.f32 0.0, %v1621
        %1623 = vdwg.mxu0
        %1624 = vrot.lane.b32.xlu0 %v390, 104
        %v1625 = vpop.permute.xlu0 %1624
        %1626 = vrot.lane.b32.xlu0 %v393, 104
        %v1627 = vpop.permute.xlu0 %1626
        %1628 = vrot.lane.b32.xlu0 %v390, 72
        %v1629 = vpop.permute.xlu0 %1628
        %1630 = vrot.lane.b32.xlu0 %v393, 72
        %v1631 = vpop.permute.xlu0 %1630
        %v1632 = vsel %vm421, %v1625, 0
        %v1634 = vsel %vm421, %v1627, 0
        %v1636 = vsel %vm421, %v1629, 0
        %v1638 = vsel %vm421, %v1631, 0
        %1640 = vmatpush.xpose.msra.mxu0 0.0
        %1641 = vmatpush.xpose.msra.mxu0 0.0
        %1642 = vmatpush.xpose.msra.mxu0 0.0
        %1643 = vmatpush.xpose.msra.mxu0 0.0
        %1644 = vmatpush.xpose.msra.mxu0 0.0
        %1645 = vmatpush.xpose.msra.mxu0 0.0
        %1646 = vmatpush.xpose.msra.mxu0 0.0
        %1647 = vmatpush.xpose.msra.mxu0 0.0
        %1648 = vmatpush.xpose.msra.mxu0 0.0
        %1649 = vmatpush.xpose.msra.mxu0 0.0
        %1650 = vmatpush.xpose.msra.mxu0 0.0
        %1651 = vmatpush.xpose.msra.mxu0 0.0
        %1652 = vmatpush.xpose.msra.mxu0 0.0
        %1653 = vmatpush.xpose.msra.mxu0 0.0
        %1654 = vmatpush.xpose.msra.mxu0 %v1638
        %1655 = vmatpush.xpose.msra.mxu0 %v1636
        %1656 = vmatmul.f32.gmra.mxu0 %v1632
        %v1657 = vpop.f32.mrf.mxu0
        %v1658 = vadd.f32 0.0, %v1657
        %1659 = vmatmul.f32.gmra.mxu0 %v1634
        %v1660 = vpop.f32.mrf.mxu0
        %v1661 = vadd.f32 0.0, %v1660
        %1662 = vdwg.mxu0
        %1663 = vrot.lane.b32.xlu0 %v396, 104
        %v1664 = vpop.permute.xlu0 %1663
        %1665 = vrot.lane.b32.xlu0 %v399, 104
        %v1666 = vpop.permute.xlu0 %1665
        %1667 = vrot.lane.b32.xlu0 %v396, 72
        %v1668 = vpop.permute.xlu0 %1667
        %1669 = vrot.lane.b32.xlu0 %v399, 72
        %v1670 = vpop.permute.xlu0 %1669
        %v1671 = vsel %vm421, %v1664, 0
        %v1673 = vsel %vm421, %v1666, 0
        %v1675 = vsel %vm421, %v1668, 0
        %v1677 = vsel %vm421, %v1670, 0
        %1679 = vmatpush.xpose.msra.mxu0 0.0
        %1680 = vmatpush.xpose.msra.mxu0 0.0
        %1681 = vmatpush.xpose.msra.mxu0 0.0
        %1682 = vmatpush.xpose.msra.mxu0 0.0
        %1683 = vmatpush.xpose.msra.mxu0 0.0
        %1684 = vmatpush.xpose.msra.mxu0 0.0
        %1685 = vmatpush.xpose.msra.mxu0 0.0
        %1686 = vmatpush.xpose.msra.mxu0 0.0
        %1687 = vmatpush.xpose.msra.mxu0 0.0
        %1688 = vmatpush.xpose.msra.mxu0 0.0
        %1689 = vmatpush.xpose.msra.mxu0 0.0
        %1690 = vmatpush.xpose.msra.mxu0 0.0
        %1691 = vmatpush.xpose.msra.mxu0 0.0
        %1692 = vmatpush.xpose.msra.mxu0 0.0
        %1693 = vmatpush.xpose.msra.mxu0 %v1677
        %1694 = vmatpush.xpose.msra.mxu0 %v1675
        %1695 = vmatmul.f32.gmra.mxu0 %v1671
        %v1696 = vpop.f32.mrf.mxu0
        %v1697 = vadd.f32 0.0, %v1696
        %1698 = vmatmul.f32.gmra.mxu0 %v1673
        %v1699 = vpop.f32.mrf.mxu0
        %v1700 = vadd.f32 0.0, %v1699
        %1701 = vdwg.mxu0
        %1702 = vrot.lane.b32.xlu0 %v402, 104
        %v1703 = vpop.permute.xlu0 %1702
        %1704 = vrot.lane.b32.xlu0 %v405, 104
        %v1705 = vpop.permute.xlu0 %1704
        %1706 = vrot.lane.b32.xlu0 %v402, 72
        %v1707 = vpop.permute.xlu0 %1706
        %1708 = vrot.lane.b32.xlu0 %v405, 72
        %v1709 = vpop.permute.xlu0 %1708
        %v1710 = vsel %vm421, %v1703, 0
        %v1712 = vsel %vm421, %v1705, 0
        %v1714 = vsel %vm421, %v1707, 0
        %v1716 = vsel %vm421, %v1709, 0
        %1718 = vmatpush.xpose.msra.mxu0 0.0
        %1719 = vmatpush.xpose.msra.mxu0 0.0
        %1720 = vmatpush.xpose.msra.mxu0 0.0
        %1721 = vmatpush.xpose.msra.mxu0 0.0
        %1722 = vmatpush.xpose.msra.mxu0 0.0
        %1723 = vmatpush.xpose.msra.mxu0 0.0
        %1724 = vmatpush.xpose.msra.mxu0 0.0
        %1725 = vmatpush.xpose.msra.mxu0 0.0
        %1726 = vmatpush.xpose.msra.mxu0 0.0
        %1727 = vmatpush.xpose.msra.mxu0 0.0
        %1728 = vmatpush.xpose.msra.mxu0 0.0
        %1729 = vmatpush.xpose.msra.mxu0 0.0
        %1730 = vmatpush.xpose.msra.mxu0 0.0
        %1731 = vmatpush.xpose.msra.mxu0 0.0
        %1732 = vmatpush.xpose.msra.mxu0 %v1716
        %1733 = vmatpush.xpose.msra.mxu0 %v1714
        %1734 = vmatmul.f32.gmra.mxu0 %v1710
        %v1735 = vpop.f32.mrf.mxu0
        %v1736 = vadd.f32 0.0, %v1735
        %1737 = vmatmul.f32.gmra.mxu0 %v1712
        %v1738 = vpop.f32.mrf.mxu0
        %v1739 = vadd.f32 0.0, %v1738
        %1740 = vdwg.mxu0
        %v1741 = vadd.f32 %v1619, %v413
        %v1742 = vadd.f32 %v1622, %v414
        %v1743 = vadd.f32 %v1658, %v413
        %v1744 = vadd.f32 %v1661, %v414
        %v1745 = vadd.f32 %v1697, %v413
        %v1746 = vadd.f32 %v1700, %v414
        %v1747 = vadd.f32 %v1736, %v413
        %v1748 = vadd.f32 %v1739, %v414
        %v1749 = vsel %vm572, %v1741, -inf
        %1750 = vmax.xlane.f32.xlu0 %v1749
        %v1751 = vpop.xlane.xlu0 %1750
        %v1752 = vsel %vm572, %v1742, -inf
        %1753 = vmax.xlane.f32.xlu0 %v1752
        %v1754 = vpop.xlane.xlu0 %1753
        %v1755 = vsel %vm572, %v1743, -inf
        %1756 = vmax.xlane.f32.xlu0 %v1755
        %v1757 = vpop.xlane.xlu0 %1756
        %v1758 = vsel %vm572, %v1744, -inf
        %1759 = vmax.xlane.f32.xlu0 %v1758
        %v1760 = vpop.xlane.xlu0 %1759
        %v1761 = vsel %vm572, %v1745, -inf
        %1762 = vmax.xlane.f32.xlu0 %v1761
        %v1763 = vpop.xlane.xlu0 %1762
        %v1764 = vsel %vm572, %v1746, -inf
        %1765 = vmax.xlane.f32.xlu0 %v1764
        %v1766 = vpop.xlane.xlu0 %1765
        %v1767 = vsel %vm572, %v1747, -inf
        %1768 = vmax.xlane.f32.xlu0 %v1767
        %v1769 = vpop.xlane.xlu0 %1768
        %v1770 = vsel %vm572, %v1748, -inf
        %1771 = vmax.xlane.f32.xlu0 %v1770
        %v1772 = vpop.xlane.xlu0 %1771
        %v1773 = vsub.f32 %v1741, %v1751
        %v1774 = vsub.f32 %v1742, %v1754
        %v1775 = vsub.f32 %v1743, %v1757
        %v1776 = vsub.f32 %v1744, %v1760
        %v1777 = vsub.f32 %v1745, %v1763
        %v1778 = vsub.f32 %v1746, %v1766
        %v1779 = vsub.f32 %v1747, %v1769
        %v1780 = vsub.f32 %v1748, %v1772
        %v1781 = vmul.f32 %v1773, 1.442695
        %v1782 = vpow.pop %v1781
        %v1783 = vmul.f32 %v1774, 1.442695
        %v1784 = vpow.pop %v1783
        %v1785 = vmul.f32 %v1775, 1.442695
        %v1786 = vpow.pop %v1785
        %v1787 = vmul.f32 %v1776, 1.442695
        %v1788 = vpow.pop %v1787
        %v1789 = vmul.f32 %v1777, 1.442695
        %v1790 = vpow.pop %v1789
        %v1791 = vmul.f32 %v1778, 1.442695
        %v1792 = vpow.pop %v1791
        %v1793 = vmul.f32 %v1779, 1.442695
        %v1794 = vpow.pop %v1793
        %v1795 = vmul.f32 %v1780, 1.442695
        %v1796 = vpow.pop %v1795
        %v1797 = vsel %vm572, %v1782, 0.0
        %1798 = vadd.xlane.f32.xlu0 %v1797
        %v1799 = vpop.xlane.xlu0 %1798
        %v1800 = vsel %vm572, %v1784, 0.0
        %1801 = vadd.xlane.f32.xlu0 %v1800
        %v1802 = vpop.xlane.xlu0 %1801
        %v1803 = vsel %vm572, %v1786, 0.0
        %1804 = vadd.xlane.f32.xlu0 %v1803
        %v1805 = vpop.xlane.xlu0 %1804
        %v1806 = vsel %vm572, %v1788, 0.0
        %1807 = vadd.xlane.f32.xlu0 %v1806
        %v1808 = vpop.xlane.xlu0 %1807
        %v1809 = vsel %vm572, %v1790, 0.0
        %1810 = vadd.xlane.f32.xlu0 %v1809
        %v1811 = vpop.xlane.xlu0 %1810
        %v1812 = vsel %vm572, %v1792, 0.0
        %1813 = vadd.xlane.f32.xlu0 %v1812
        %v1814 = vpop.xlane.xlu0 %1813
        %v1815 = vsel %vm572, %v1794, 0.0
        %1816 = vadd.xlane.f32.xlu0 %v1815
        %v1817 = vpop.xlane.xlu0 %1816
        %v1818 = vsel %vm572, %v1796, 0.0
        %1819 = vadd.xlane.f32.xlu0 %v1818
        %v1820 = vpop.xlane.xlu0 %1819
        %v1821 = vrcp.pop %v1799
        %v1822 = vrcp.pop %v1802
        %v1823 = vrcp.pop %v1805
        %v1824 = vrcp.pop %v1808
        %v1825 = vrcp.pop %v1811
        %v1826 = vrcp.pop %v1814
        %v1827 = vrcp.pop %v1817
        %v1828 = vrcp.pop %v1820
        %1829 = vrot.lane.b32.xlu0 %v384, 40
        %v1830 = vpop.permute.xlu0 %1829
        %1831 = vrot.lane.b32.xlu0 %v387, 40
        %v1832 = vpop.permute.xlu0 %1831
        %v1836 = vsel %vm572, %v1782, 0
        %v1839 = vsel %vm572, %v1784, 0
        %1841 = vmatpush.msra.mxu0 0.0
        %1842 = vmatpush.msra.mxu0 0.0
        %1843 = vmatpush.msra.mxu0 0.0
        %1844 = vmatpush.msra.mxu0 0.0
        %1845 = vmatpush.msra.mxu0 0.0
        %1846 = vmatpush.msra.mxu0 0.0
        %1847 = vmatpush.msra.mxu0 0.0
        %1848 = vmatpush.msra.mxu0 0.0
        %1849 = vmatpush.msra.mxu0 0.0
        %1850 = vmatpush.msra.mxu0 0.0
        %1851 = vmatpush.msra.mxu0 0.0
        %1852 = vmatpush.msra.mxu0 0.0
        %1853 = vmatpush.msra.mxu0 0.0
        %1854 = vmatpush.msra.mxu0 0.0
        %1855 = vmatpush.msra.mxu0 %v1832
        %1856 = vmatpush.msra.mxu0 %v1830
        %1857 = vmatmul.f32.gmra.mxu0 %v1836
        %v1858 = vpop.f32.mrf.mxu0
        %v1859 = vadd.f32 0.0, %v1858
        %1860 = vmatmul.f32.gmra.mxu0 %v1839
        %v1861 = vpop.f32.mrf.mxu0
        %v1862 = vadd.f32 0.0, %v1861
        %1863 = vdwg.mxu0
        %1864 = vrot.lane.b32.xlu0 %v390, 40
        %v1865 = vpop.permute.xlu0 %1864
        %1866 = vrot.lane.b32.xlu0 %v393, 40
        %v1867 = vpop.permute.xlu0 %1866
        %v1871 = vsel %vm572, %v1786, 0
        %v1874 = vsel %vm572, %v1788, 0
        %1876 = vmatpush.msra.mxu0 0.0
        %1877 = vmatpush.msra.mxu0 0.0
        %1878 = vmatpush.msra.mxu0 0.0
        %1879 = vmatpush.msra.mxu0 0.0
        %1880 = vmatpush.msra.mxu0 0.0
        %1881 = vmatpush.msra.mxu0 0.0
        %1882 = vmatpush.msra.mxu0 0.0
        %1883 = vmatpush.msra.mxu0 0.0
        %1884 = vmatpush.msra.mxu0 0.0
        %1885 = vmatpush.msra.mxu0 0.0
        %1886 = vmatpush.msra.mxu0 0.0
        %1887 = vmatpush.msra.mxu0 0.0
        %1888 = vmatpush.msra.mxu0 0.0
        %1889 = vmatpush.msra.mxu0 0.0
        %1890 = vmatpush.msra.mxu0 %v1867
        %1891 = vmatpush.msra.mxu0 %v1865
        %1892 = vmatmul.f32.gmra.mxu0 %v1871
        %v1893 = vpop.f32.mrf.mxu0
        %v1894 = vadd.f32 0.0, %v1893
        %1895 = vmatmul.f32.gmra.mxu0 %v1874
        %v1896 = vpop.f32.mrf.mxu0
        %v1897 = vadd.f32 0.0, %v1896
        %1898 = vdwg.mxu0
        %1899 = vrot.lane.b32.xlu0 %v396, 40
        %v1900 = vpop.permute.xlu0 %1899
        %1901 = vrot.lane.b32.xlu0 %v399, 40
        %v1902 = vpop.permute.xlu0 %1901
        %v1906 = vsel %vm572, %v1790, 0
        %v1909 = vsel %vm572, %v1792, 0
        %1911 = vmatpush.msra.mxu0 0.0
        %1912 = vmatpush.msra.mxu0 0.0
        %1913 = vmatpush.msra.mxu0 0.0
        %1914 = vmatpush.msra.mxu0 0.0
        %1915 = vmatpush.msra.mxu0 0.0
        %1916 = vmatpush.msra.mxu0 0.0
        %1917 = vmatpush.msra.mxu0 0.0
        %1918 = vmatpush.msra.mxu0 0.0
        %1919 = vmatpush.msra.mxu0 0.0
        %1920 = vmatpush.msra.mxu0 0.0
        %1921 = vmatpush.msra.mxu0 0.0
        %1922 = vmatpush.msra.mxu0 0.0
        %1923 = vmatpush.msra.mxu0 0.0
        %1924 = vmatpush.msra.mxu0 0.0
        %1925 = vmatpush.msra.mxu0 %v1902
        %1926 = vmatpush.msra.mxu0 %v1900
        %1927 = vmatmul.f32.gmra.mxu0 %v1906
        %v1928 = vpop.f32.mrf.mxu0
        %v1929 = vadd.f32 0.0, %v1928
        %1930 = vmatmul.f32.gmra.mxu0 %v1909
        %v1931 = vpop.f32.mrf.mxu0
        %v1932 = vadd.f32 0.0, %v1931
        %1933 = vdwg.mxu0
        %1934 = vrot.lane.b32.xlu0 %v402, 40
        %v1935 = vpop.permute.xlu0 %1934
        %1936 = vrot.lane.b32.xlu0 %v405, 40
        %v1937 = vpop.permute.xlu0 %1936
        %v1941 = vsel %vm572, %v1794, 0
        %v1944 = vsel %vm572, %v1796, 0
        %1946 = vmatpush.msra.mxu0 0.0
        %1947 = vmatpush.msra.mxu0 0.0
        %1948 = vmatpush.msra.mxu0 0.0
        %1949 = vmatpush.msra.mxu0 0.0
        %1950 = vmatpush.msra.mxu0 0.0
        %1951 = vmatpush.msra.mxu0 0.0
        %1952 = vmatpush.msra.mxu0 0.0
        %1953 = vmatpush.msra.mxu0 0.0
        %1954 = vmatpush.msra.mxu0 0.0
        %1955 = vmatpush.msra.mxu0 0.0
        %1956 = vmatpush.msra.mxu0 0.0
        %1957 = vmatpush.msra.mxu0 0.0
        %1958 = vmatpush.msra.mxu0 0.0
        %1959 = vmatpush.msra.mxu0 0.0
        %1960 = vmatpush.msra.mxu0 %v1937
        %1961 = vmatpush.msra.mxu0 %v1935
        %1962 = vmatmul.f32.gmra.mxu0 %v1941
        %v1963 = vpop.f32.mrf.mxu0
        %v1964 = vadd.f32 0.0, %v1963
        %1965 = vmatmul.f32.gmra.mxu0 %v1944
        %v1966 = vpop.f32.mrf.mxu0
        %v1967 = vadd.f32 0.0, %v1966
        %1968 = vdwg.mxu0
        %v1969 = vmul.f32 %v1859, %v1821
        %v1970 = vmul.f32 %v1862, %v1822
        %v1971 = vmul.f32 %v1894, %v1823
        %v1972 = vmul.f32 %v1897, %v1824
        %v1973 = vmul.f32 %v1929, %v1825
        %v1974 = vmul.f32 %v1932, %v1826
        %v1975 = vmul.f32 %v1964, %v1827
        %v1976 = vmul.f32 %v1967, %v1828
        %1985 = vrot.lane.b32.xlu0 %v1185, 8
        %v1986 = vpop.permute.xlu0 %1985
        %1987 = vrot.lane.b32.xlu0 %v1186, 8
        %v1988 = vpop.permute.xlu0 %1987
        %1989 = vrot.lane.b32.xlu0 %v1187, 8
        %v1990 = vpop.permute.xlu0 %1989
        %1991 = vrot.lane.b32.xlu0 %v1188, 8
        %v1992 = vpop.permute.xlu0 %1991
        %1993 = vrot.lane.b32.xlu0 %v1189, 8
        %v1994 = vpop.permute.xlu0 %1993
        %1995 = vrot.lane.b32.xlu0 %v1190, 8
        %v1996 = vpop.permute.xlu0 %1995
        %1997 = vrot.lane.b32.xlu0 %v1191, 8
        %v1998 = vpop.permute.xlu0 %1997
        %1999 = vrot.lane.b32.xlu0 %v1192, 8
        %v2000 = vpop.permute.xlu0 %1999
        %2017 = vrot.lane.b32.xlu0 %v1577, 16
        %v2018 = vpop.permute.xlu0 %2017
        %2019 = vrot.lane.b32.xlu0 %v1578, 16
        %v2020 = vpop.permute.xlu0 %2019
        %2021 = vrot.lane.b32.xlu0 %v1579, 16
        %v2022 = vpop.permute.xlu0 %2021
        %2023 = vrot.lane.b32.xlu0 %v1580, 16
        %v2024 = vpop.permute.xlu0 %2023
        %2025 = vrot.lane.b32.xlu0 %v1581, 16
        %v2026 = vpop.permute.xlu0 %2025
        %2027 = vrot.lane.b32.xlu0 %v1582, 16
        %v2028 = vpop.permute.xlu0 %2027
        %2029 = vrot.lane.b32.xlu0 %v1583, 16
        %v2030 = vpop.permute.xlu0 %2029
        %2031 = vrot.lane.b32.xlu0 %v1584, 16
        %v2032 = vpop.permute.xlu0 %2031
        %2049 = vrot.lane.b32.xlu0 %v1969, 24
        %v2050 = vpop.permute.xlu0 %2049
        %2051 = vrot.lane.b32.xlu0 %v1970, 24
        %v2052 = vpop.permute.xlu0 %2051
        %2053 = vrot.lane.b32.xlu0 %v1971, 24
        %v2054 = vpop.permute.xlu0 %2053
        %2055 = vrot.lane.b32.xlu0 %v1972, 24
        %v2056 = vpop.permute.xlu0 %2055
        %2057 = vrot.lane.b32.xlu0 %v1973, 24
        %v2058 = vpop.permute.xlu0 %2057
        %2059 = vrot.lane.b32.xlu0 %v1974, 24
        %v2060 = vpop.permute.xlu0 %2059
        %2061 = vrot.lane.b32.xlu0 %v1975, 24
        %v2062 = vpop.permute.xlu0 %2061
        %2063 = vrot.lane.b32.xlu0 %v1976, 24
        %v2064 = vpop.permute.xlu0 %2063
        %v2073 = vsel %vm421, %v793, %v1986
        %v2074 = vsel %vm421, %v794, %v1988
        %v2075 = vsel %vm421, %v795, %v1990
        %v2076 = vsel %vm421, %v796, %v1992
        %v2077 = vsel %vm421, %v797, %v1994
        %v2078 = vsel %vm421, %v798, %v1996
        %v2079 = vsel %vm421, %v799, %v1998
        %v2080 = vsel %vm421, %v800, %v2000
        %v2081 = vsel %vm572, %v2073, %v2018
        %v2082 = vsel %vm572, %v2074, %v2020
        %v2083 = vsel %vm572, %v2075, %v2022
        %v2084 = vsel %vm572, %v2076, %v2024
        %v2085 = vsel %vm572, %v2077, %v2026
        %v2086 = vsel %vm572, %v2078, %v2028
        %v2087 = vsel %vm572, %v2079, %v2030
        %v2088 = vsel %vm572, %v2080, %v2032
        %vm2089 = vcmask 195584
        %v2090 = vsel %vm2089, %v2081, %v2050
        %v2091 = vsel %vm2089, %v2082, %v2052
        %v2092 = vsel %vm2089, %v2083, %v2054
        %v2093 = vsel %vm2089, %v2084, %v2056
        %v2094 = vsel %vm2089, %v2085, %v2058
        %v2095 = vsel %vm2089, %v2086, %v2060
        %v2096 = vsel %vm2089, %v2087, %v2062
        %v2097 = vsel %vm2089, %v2088, %v2064
        %v2098 = vld [vmem:[#allocation8] sm:$0xff]
        %v2099 = vld [vmem:[#allocation8 + $0x8] sm:$0xff]
        %v2100 = vld [vmem:[#allocation8 + $0x10] sm:$0xff]
        %v2101 = vld [vmem:[#allocation8 + $0x18] sm:$0xff]
        %v2102 = vld [vmem:[%s5] sm:$0x1]
        %v2104 = vperm.slane %v2102, 0
        %v2107 = vsel %vm341, %v2090, 0
        %v2110 = vsel %vm341, %v2091, 0
        %v2113 = vsel %vm341, %v2092, 0
        %v2116 = vsel %vm341, %v2093, 0
        %v2119 = vsel %vm341, %v2094, 0
        %v2122 = vsel %vm341, %v2095, 0
        %v2125 = vsel %vm341, %v2096, 0
        %v2128 = vsel %vm341, %v2097, 0
        %2130 = vmatpush.msra.mxu0 0.0
        %2131 = vmatpush.msra.mxu0 0.0
        %2132 = vmatpush.msra.mxu0 0.0
        %2133 = vmatpush.msra.mxu0 0.0
        %2134 = vmatpush.msra.mxu0 0.0
        %2135 = vmatpush.msra.mxu0 0.0
        %2136 = vmatpush.msra.mxu0 0.0
        %2137 = vmatpush.msra.mxu0 0.0
        %2138 = vmatpush.msra.mxu0 0.0
        %2139 = vmatpush.msra.mxu0 0.0
        %2140 = vmatpush.msra.mxu0 0.0
        %2141 = vmatpush.msra.mxu0 0.0
        %2142 = vmatpush.msra.mxu0 %v2101
        %2143 = vmatpush.msra.mxu0 %v2100
        %2144 = vmatpush.msra.mxu0 %v2099
        %2145 = vmatpush.msra.mxu0 %v2098
        %2146 = vmatmul.f32.gmra.mxu0 %v2107
        %v2147 = vpop.f32.mrf.mxu0
        %v2148 = vadd.f32 %v2104, %v2147
        %2149 = vmatmul.f32.gmra.mxu0 %v2110
        %v2150 = vpop.f32.mrf.mxu0
        %v2151 = vadd.f32 %v2104, %v2150
        %2152 = vmatmul.f32.gmra.mxu0 %v2113
        %v2153 = vpop.f32.mrf.mxu0
        %v2154 = vadd.f32 %v2104, %v2153
        %2155 = vmatmul.f32.gmra.mxu0 %v2116
        %v2156 = vpop.f32.mrf.mxu0
        %v2157 = vadd.f32 %v2104, %v2156
        %2158 = vmatmul.f32.gmra.mxu0 %v2119
        %v2159 = vpop.f32.mrf.mxu0
        %v2160 = vadd.f32 %v2104, %v2159
        %2161 = vmatmul.f32.gmra.mxu0 %v2122
        %v2162 = vpop.f32.mrf.mxu0
        %v2163 = vadd.f32 %v2104, %v2162
        %2164 = vmatmul.f32.gmra.mxu0 %v2125
        %v2165 = vpop.f32.mrf.mxu0
        %v2166 = vadd.f32 %v2104, %v2165
        %2167 = vmatmul.f32.gmra.mxu0 %v2128
        %v2168 = vpop.f32.mrf.mxu0
        %v2169 = vadd.f32 %v2104, %v2168
        %2170 = vdwg.mxu0
        %2171 = vst.msk [vmem:[%s322] sm:$0xff] %vm341, %v2148
        %2172 = vst.msk [vmem:[%s322 + $0x8] sm:$0xff] %vm341, %v2151
        %2173 = vst.msk [vmem:[%s322 + $0x10] sm:$0xff] %vm341, %v2154
        %2174 = vst.msk [vmem:[%s322 + $0x18] sm:$0xff] %vm341, %v2157
        %2175 = vst.msk [vmem:[%s322 + $0x20] sm:$0xff] %vm341, %v2160
        %2176 = vst.msk [vmem:[%s322 + $0x28] sm:$0xff] %vm341, %v2163
        %2177 = vst.msk [vmem:[%s322 + $0x30] sm:$0xff] %vm341, %v2166
        %2178 = vst.msk [vmem:[%s322 + $0x38] sm:$0xff] %vm341, %v2169
        %s2179 = sand.u32 %s164, 1
        %s2180 = scalar_lea.sflag [#allocation4], %s2179
        %s2181 = sand.u32 %s164, 1
        %s2182 = smul.addr %s2181, 64
        %s2183 = scalar_lea.vmem [#allocation10], %s2182
        // Predicated region
        $region61: #{tpu_custom_call.1} parent=43 // pred_check
          %p2184 = pneg %p174
        $region62: #{tpu_custom_call.1} parent=43 // pred_check_branch
          %2186 = sbr.rel (%p2184) target = $region64
        $region63: #{tpu_custom_call.1} parent=43 // pred_region
          %s2187 = smul.u32 4, %s25
          %2189 = vsyncadd %s2180, 0
          %s2190 = smul.addr %s2187, 2
          %s2191 = smul.addr %s2190, 8
          %s2192 = scalar_lea.hbm %s6, %s2191
          %s2193 = sshll.u32 %s2183, 4
          %s2194 = int_to_ptr.vmem [resolvable:$true] %s2193
          %s2195 = sshll.u32 %s2192, 4
          %s2196 = int_to_ptr.hbm [resolvable:$true] %s2195
          %2201 = dma.vmem_to_hbm [thread:$0]  %s2194, 1024, %s2196, %s2180, 128, 128, 8
        $region64: #{tpu_custom_call.1} parent=43 // pred_fallthru
          _
      $region44: #{tpu_custom_call.1} parent=5 // pred_fallthru
        _
      %p2202 = scmp.le.s32.totalorder 2, %s20
      // Predicated region
      $region65: #{tpu_custom_call.1} parent=5 // pred_check
        %p2203 = pneg %p2202
      $region66: #{tpu_custom_call.1} parent=5 // pred_check_branch
        %2205 = sbr.rel (%p2203) target = $region68
      $region67: #{tpu_custom_call.1} parent=5 // pred_region
        %s2206 = ssub.s32 %s20, 2
        // Predicated region
        $region69: #{tpu_custom_call.1} parent=67 // pred_check
          %p2207 = pneg %p180
        $region70: #{tpu_custom_call.1} parent=67 // pred_check_branch
          %2209 = sbr.rel (%p2207) target = $region72
        $region71: #{tpu_custom_call.1} parent=67 // pred_region
          %s2210 = sand.u32 %s165, 1
          %s2211 = scalar_lea.sflag [#allocation4], %s2210
          %s2212 = sand.u32 %s165, 1
          %s2213 = smul.addr %s2212, 64
          %s2214 = scalar_lea.vmem [#allocation10], %s2213
          %2216 = dma.done %s2211, 1024
        $region72: #{tpu_custom_call.1} parent=67 // pred_fallthru
          _
      $region68: #{tpu_custom_call.1} parent=5 // pred_fallthru
        _
    $region6: #{tpu_custom_call.1} parent=1 // loop_footer
      %s24 = sadd.s32 1, %s20
    $region7: #{tpu_custom_call.1} parent=1 // loop_footer_branch
      %19 = sbr.rel target = $region3
    $region8: #{tpu_custom_call.1} parent=1 // loop_exit
      _
    %2217 = vsyncpa [#allocation3], 1
    %s2218 = scalar_lea.sflag [#allocation3], 1
    %2219 = vsyncpa %s2218, 1
    %2220 = vsyncpa [#allocation6], 1
    %2221 = vsyncpa [#allocation9], 1
    %2222 = vsyncpa [#allocation4], 1
    %s2223 = scalar_lea.sflag [#allocation4], 1
    %2224 = vsyncpa %s2223, 1

</llo_original>
